<compile_context>
chip_gen: v5e
topology: v5e:2x2
jax: 0.10.0
libtpu: 0.0.40
codegen_flags: <defaults>
</compile_context>

<pallas_src>
import functools

import jax
import jax.numpy as jnp
import numpy as np
from jax import lax
from jax.experimental import pallas as pl
from jax.experimental.pallas import tpu as pltpu

LANES = 128
SUBLANES = 8


def _pick_block_parts(n, m, d, max_bytes=2 << 20, max_bn=8):
    """Largest divisor of n (<= max_bn) whose feature block stays small in VMEM."""
    best = 1
    for bn in range(1, n + 1):
        if n % bn:
            continue
        if bn <= max_bn and bn * m * d * 4 <= max_bytes:
            best = bn
    return best


def _triplet_kernel(margin, m, d, bn,
                    f_ref, lrow_ref, lcol_ref, metrics_ref):
    # Hoisted iotas (built once per grid step, reused by every part).
    rid = lax.broadcasted_iota(jnp.int32, (m, m), 0)
    cid = lax.broadcasted_iota(jnp.int32, (m, m), 1)
    eye = rid == cid
    cls_idx = lax.broadcasted_iota(jnp.int32, (m, d), 1)
    sub = lax.broadcasted_iota(jnp.int32, (SUBLANES, LANES), 0)

    # Static loop over the B_n parts held in this block (B_n is small).
    for p in range(bn):
        x = f_ref[p]                      # (m, d) f32
        lrow = lrow_ref[p]                # (1, m) i32
        lcol = lcol_ref[p]                # (m, 1) i32

        # ---- batch_dist: pairwise Euclidean distances (gram on MXU) ----------
        gram = lax.dot_general(x, x, (((1,), (1,)), ((), ())),
                               preferred_element_type=jnp.float32)    # x @ x.T
        x2_col = jnp.sum(x * x, axis=1, keepdims=True)                 # (m, 1)
        x2_row = jnp.sum(jnp.where(eye, gram, 0.0), axis=0, keepdims=True)  # (1, m)
        dist = jnp.sqrt(jnp.maximum(x2_col + x2_row - 2.0 * gram, 0.0))     # (m, m), symmetric
        mean_dist = jnp.mean(dist)                                     # == .mean(1).mean(1)

        # ---- positive / negative masks ---------------------------------------
        hp = lcol == lrow                                              # (m, m) bool, symmetric
        hn = jnp.logical_not(hp)
        hpf = hp.astype(jnp.float32)
        hnf = hn.astype(jnp.float32)

        # ---- hard triplet loss ------------------------------------------------
        hard_hp = jnp.max(jnp.where(hp, dist, -jnp.inf), axis=1, keepdims=True)
        hard_hn = jnp.min(jnp.where(hn, dist, jnp.inf), axis=1, keepdims=True)
        hard_mean = jnp.mean(jnp.maximum(margin + hard_hp - hard_hn, 0.0))

        # ---- full triplet loss -------------------------------------------------
        # Loop over negative index k. dist / hn are symmetric, so column k is
        # simply row k: a static sublane slice broadcast across sublanes.
        # Body is pure VPU elementwise; matrix accumulators, one reduction at
        # the end. (For very large m, switch to lax.fori_loop + VMEM scratch to
        # bound the unroll / register pressure.)
        margin_plus = margin + dist
        s_mat = jnp.zeros((m, m), jnp.float32)
        c_mat = jnp.zeros((m, m), jnp.float32)
        for k in range(m):
            row_d = dist[k:k + 1, :]      # (1, m) == D[:, k] (symmetry)
            row_n = hnf[k:k + 1, :]       # (1, m) == hn[:, k]
            v = hpf * jnp.maximum(margin_plus - row_d, 0.0) * row_n
            s_mat = s_mat + v
            c_mat = c_mat + (v > 0.0).astype(jnp.float32)
        full_sum = jnp.sum(s_mat)
        full_num = jnp.sum(c_mat)
        full_mean = jnp.where(full_num > 0.0,
                              full_sum / jnp.maximum(full_num, 1.0), 0.0)

        # ---- cross entropy (feature rows as logits over d classes) -------------
        mx = jnp.max(x, axis=1, keepdims=True)                         # (m, 1)
        lse = mx + jnp.log(jnp.sum(jnp.exp(x - mx), axis=1, keepdims=True))
        true_logit = jnp.sum(jnp.where(cls_idx == lcol, x, 0.0),
                             axis=1, keepdims=True)
        ce_part = jnp.sum(lse - true_logit)                            # sum over m rows

        # ---- accuracy (argmax over d, first max on ties) ------------------------
        pred = jnp.min(jnp.where(x == mx, cls_idx, d), axis=1, keepdims=True)
        correct_part = jnp.sum((pred == lcol).astype(jnp.float32))

        # ---- pack all six per-part scalars into one (8, 128) tile ---------------
        packed = (jnp.where(sub == 0, full_mean, 0.0)
                  + jnp.where(sub == 1, hard_mean, 0.0)
                  + jnp.where(sub == 2, mean_dist, 0.0)
                  + jnp.where(sub == 3, full_num, 0.0)
                  + jnp.where(sub == 4, ce_part, 0.0)
                  + jnp.where(sub == 5, correct_part, 0.0))
        metrics_ref[p] = packed.astype(jnp.float32)


def triplet_loss_pallas(feature, label, margin, block_parts=None):
    n, m, d = feature.shape
    feature = feature.astype(jnp.float32)
    label = label.astype(jnp.int32)
    lrow = label.reshape(n, 1, m)
    lcol = label.reshape(n, m, 1)

    bn = _pick_block_parts(n, m, d) if block_parts is None else block_parts
    assert n % bn == 0

    kernel = functools.partial(_triplet_kernel, float(margin), m, d, bn)

    grid_spec = pltpu.PrefetchScalarGridSpec(
        num_scalar_prefetch=0,
        grid=(n // bn,),
        in_specs=[
            pl.BlockSpec((bn, m, d), lambda i: (i, 0, 0)),
            pl.BlockSpec((bn, 1, m), lambda i: (i, 0, 0)),
            pl.BlockSpec((bn, m, 1), lambda i: (i, 0, 0)),
        ],
        out_specs=pl.BlockSpec((bn, SUBLANES, LANES), lambda i: (i, 0, 0)),
    )

    metrics = pl.pallas_call(
        kernel,
        out_shape=jax.ShapeDtypeStruct((n, SUBLANES, LANES), jnp.float32),
        grid_spec=grid_spec,
        # No resident accumulators -> the part axis is fully parallel
        # (shards across the 2 TensorCores on v7x; harmless on v5e/v6e).
        compiler_params=pltpu.CompilerParams(dimension_semantics=("parallel",)),
    )(feature, lrow, lcol)

    full_mean = metrics[:, 0, 0]
    hard_mean = metrics[:, 1, 0]
    mean_dist = metrics[:, 2, 0]
    full_num = metrics[:, 3, 0]
    entropy_loss = jnp.sum(metrics[:, 4, 0]) / (n * m)
    accuracy = jnp.sum(metrics[:, 5, 0]) / (n * m + 0.0001)
    return full_mean, hard_mean, mean_dist, full_num, entropy_loss, accuracy


def ref_forward(feature, label, margin):
    """Pure-JAX reference reproducing the PyTorch forward."""
    n, m, d = feature.shape
    x = feature.astype(jnp.float32)
    x2 = jnp.sum(x * x, axis=2)
    gram = jnp.einsum('nmd,nkd->nmk', x, x, precision=jax.lax.Precision.HIGHEST)
    dist = jnp.sqrt(jnp.maximum(x2[:, :, None] + x2[:, None, :] - 2.0 * gram, 0.0))
    mean_dist = jnp.mean(dist, axis=(1, 2))
    hp = label[:, :, None] == label[:, None, :]
    hn = ~hp
    hard_hp = jnp.max(jnp.where(hp, dist, -jnp.inf), axis=2)
    hard_hn = jnp.min(jnp.where(hn, dist, jnp.inf), axis=2)
    hard_mean = jnp.mean(jnp.maximum(margin + hard_hp - hard_hn, 0.0), axis=1)
    diff = margin + dist[:, :, :, None] - dist[:, :, None, :]
    mask = hp[:, :, :, None] & hn[:, :, None, :]
    vals = jnp.where(mask, jnp.maximum(diff, 0.0), 0.0)
    full_sum = jnp.sum(vals, axis=(1, 2, 3))
    full_num = jnp.sum((vals > 0).astype(jnp.float32), axis=(1, 2, 3))
    full_mean = jnp.where(full_num > 0, full_sum / jnp.maximum(full_num, 1.0), 0.0)
    logits = x.reshape(n * m, d)
    lbl = label.reshape(n * m)
    lse = jax.scipy.special.logsumexp(logits, axis=1)
    ce = jnp.mean(lse - logits[jnp.arange(n * m), lbl])
    pred = jnp.argmax(logits, axis=1)
    acc = jnp.sum((pred == lbl).astype(jnp.float32)) / (n * m + 0.0001)
    return full_mean, hard_mean, mean_dist, full_num, ce, acc


if __name__ == "__main__":
    key = jax.random.PRNGKey(0)
    n, m, d = 4, 8, 32           # parts, samples (2 ids x 4 samples), feature dim
    margin = 0.2

    feature = jax.random.normal(key, (n, m, d), dtype=jnp.float32)
    label_1d = jnp.array([0, 0, 0, 0, 1, 1, 1, 1], dtype=jnp.int32)
    label = jnp.broadcast_to(label_1d, (n, m))

    outs = triplet_loss_pallas(feature, label, margin)
    outs = jax.block_until_ready(outs)

    refs = ref_forward(feature, label, margin)
    for got, want in zip(outs, refs):
        np.testing.assert_allclose(np.asarray(got), np.asarray(want),
                                   rtol=1e-2, atol=1e-2)

    print("KERNEL_OK")
</pallas_src>

<mosaic_0001>
module attributes {stable_mosaic.version = 11 : i64} {
  func.func @_triplet_kernel(%arg0: i32, %arg1: memref<4x8x32xf32, #tpu.memory_space<vmem>>, %arg2: memref<4x1x8xi32, #tpu.memory_space<vmem>>, %arg3: memref<4x8x1xi32, #tpu.memory_space<vmem>>, %arg4: memref<4x8x128xf32, #tpu.memory_space<vmem>>) attributes {dimension_semantics = [#tpu.dimension_semantics<parallel>], iteration_bounds = array<i64: 1>, scalar_prefetch = 0 : i64, scratch_operands = 0 : i64, tpu.core_type = #tpu.core_type<tc>, window_params = [{transform_indices = @transform_0, window_bounds = array<i64: 4, 8, 32>}, {transform_indices = @transform_1, window_bounds = array<i64: 4, 1, 8>}, {transform_indices = @transform_2, window_bounds = array<i64: 4, 8, 1>}, {transform_indices = @transform_3, window_bounds = array<i64: 4, 8, 128>}]} {
    %0 = tpu.iota {dimensions = array<i32: 0>} : vector<8x8xi32>
    %1 = tpu.iota {dimensions = array<i32: 1>} : vector<8x8xi32>
    %2 = arith.cmpi eq, %0, %1 : vector<8x8xi32>
    %3 = tpu.iota {dimensions = array<i32: 1>} : vector<8x32xi32>
    %4 = tpu.iota {dimensions = array<i32: 0>} : vector<8x128xi32>
    %c0 = arith.constant 0 : index
    %c0_0 = arith.constant 0 : index
    %c0_1 = arith.constant 0 : index
    %5 = vector.load %arg1[%c0, %c0_0, %c0_1] : memref<4x8x32xf32, #tpu.memory_space<vmem>>, vector<1x8x32xf32>
    %6 = vector.shape_cast %5 : vector<1x8x32xf32> to vector<8x32xf32>
    %c0_2 = arith.constant 0 : index
    %c0_3 = arith.constant 0 : index
    %c0_4 = arith.constant 0 : index
    %7 = vector.load %arg2[%c0_2, %c0_3, %c0_4] : memref<4x1x8xi32, #tpu.memory_space<vmem>>, vector<1x1x8xi32>
    %8 = vector.shape_cast %7 : vector<1x1x8xi32> to vector<1x8xi32>
    %c0_5 = arith.constant 0 : index
    %c0_6 = arith.constant 0 : index
    %c0_7 = arith.constant 0 : index
    %9 = vector.load %arg3[%c0_5, %c0_6, %c0_7] : memref<4x8x1xi32, #tpu.memory_space<vmem>>, vector<1x8x1xi32>
    %10 = vector.shape_cast %9 : vector<1x8x1xi32> to vector<8x1xi32>
    %cst = arith.constant dense<0.000000e+00> : vector<8x8xf32>
    %11 = tpu.matmul %6, %6, %cst {dimension_numbers = #tpu.dot_dimension_numbers<[1], [1], [0], [0], [0, 0, 1, 0], [], []>} : vector<8x32xf32>, vector<8x32xf32>, vector<8x8xf32> -> vector<8x8xf32>
    %12 = arith.mulf %6, %6 : vector<8x32xf32>
    %cst_8 = arith.constant dense<0.000000e+00> : vector<8xf32>
    %13 = vector.multi_reduction <add>, %12, %cst_8 [1] : vector<8x32xf32> to vector<8xf32>
    %14 = vector.shape_cast %13 : vector<8xf32> to vector<8x1xf32>
    %cst_9 = arith.constant 0.000000e+00 : f32
    %15 = vector.broadcast %cst_9 : f32 to vector<8x8xf32>
    %16 = arith.select %2, %11, %15 : vector<8x8xi1>, vector<8x8xf32>
    %cst_10 = arith.constant dense<0.000000e+00> : vector<8xf32>
    %17 = vector.multi_reduction <add>, %16, %cst_10 [0] : vector<8x8xf32> to vector<8xf32>
    %18 = vector.shape_cast %17 : vector<8xf32> to vector<1x8xf32>
    %19 = vector.broadcast %14 : vector<8x1xf32> to vector<8x8xf32>
    %20 = vector.broadcast %18 : vector<1x8xf32> to vector<8x8xf32>
    %21 = arith.addf %19, %20 : vector<8x8xf32>
    %cst_11 = arith.constant 2.000000e+00 : f32
    %22 = vector.broadcast %cst_11 : f32 to vector<8x8xf32>
    %23 = arith.mulf %22, %11 : vector<8x8xf32>
    %24 = arith.subf %21, %23 : vector<8x8xf32>
    %cst_12 = arith.constant 0.000000e+00 : f32
    %25 = vector.broadcast %cst_12 : f32 to vector<8x8xf32>
    %26 = arith.maximumf %24, %25 : vector<8x8xf32>
    %27 = math.sqrt %26 : vector<8x8xf32>
    %28 = vector.shape_cast %27 : vector<8x8xf32> to vector<1x8x8xf32>
    %cst_13 = arith.constant dense<0.000000e+00> : vector<1xf32>
    %29 = vector.multi_reduction <add>, %28, %cst_13 [1, 2] : vector<1x8x8xf32> to vector<1xf32>
    %30 = vector.shape_cast %29 : vector<1xf32> to vector<1x1x1xf32>
    %31 = vector.extract %30[0, 0, 0] : f32 from vector<1x1x1xf32>
    %cst_14 = arith.constant 6.400000e+01 : f32
    %32 = arith.divf %31, %cst_14 : f32
    %33 = vector.broadcast %10 : vector<8x1xi32> to vector<8x8xi32>
    %34 = vector.broadcast %8 : vector<1x8xi32> to vector<8x8xi32>
    %35 = arith.cmpi eq, %33, %34 : vector<8x8xi32>
    %cst_15 = arith.constant dense<true> : vector<8x8xi1>
    %36 = arith.xori %35, %cst_15 : vector<8x8xi1>
    %37 = arith.extui %35 : vector<8x8xi1> to vector<8x8xi32>
    %38 = arith.sitofp %37 : vector<8x8xi32> to vector<8x8xf32>
    %39 = arith.extui %36 : vector<8x8xi1> to vector<8x8xi32>
    %40 = arith.sitofp %39 : vector<8x8xi32> to vector<8x8xf32>
    %cst_16 = arith.constant 0xFF800000 : f32
    %41 = vector.broadcast %cst_16 : f32 to vector<8x8xf32>
    %42 = arith.select %35, %27, %41 : vector<8x8xi1>, vector<8x8xf32>
    %cst_17 = arith.constant dense<0xFF800000> : vector<8xf32>
    %43 = vector.multi_reduction <maximumf>, %42, %cst_17 [1] : vector<8x8xf32> to vector<8xf32>
    %44 = vector.shape_cast %43 : vector<8xf32> to vector<8x1xf32>
    %cst_18 = arith.constant 0x7F800000 : f32
    %45 = vector.broadcast %cst_18 : f32 to vector<8x8xf32>
    %46 = arith.select %36, %27, %45 : vector<8x8xi1>, vector<8x8xf32>
    %cst_19 = arith.constant dense<0x7F800000> : vector<8xf32>
    %47 = vector.multi_reduction <minimumf>, %46, %cst_19 [1] : vector<8x8xf32> to vector<8xf32>
    %48 = vector.shape_cast %47 : vector<8xf32> to vector<8x1xf32>
    %cst_20 = arith.constant 2.000000e-01 : f32
    %49 = vector.broadcast %cst_20 : f32 to vector<8x1xf32>
    %50 = arith.addf %49, %44 : vector<8x1xf32>
    %51 = arith.subf %50, %48 : vector<8x1xf32>
    %cst_21 = arith.constant 0.000000e+00 : f32
    %52 = vector.broadcast %cst_21 : f32 to vector<8x1xf32>
    %53 = arith.maximumf %51, %52 : vector<8x1xf32>
    %54 = vector.shape_cast %53 : vector<8x1xf32> to vector<1x8x1xf32>
    %cst_22 = arith.constant dense<0.000000e+00> : vector<1xf32>
    %55 = vector.multi_reduction <add>, %54, %cst_22 [1, 2] : vector<1x8x1xf32> to vector<1xf32>
    %56 = vector.shape_cast %55 : vector<1xf32> to vector<1x1x1xf32>
    %57 = vector.extract %56[0, 0, 0] : f32 from vector<1x1x1xf32>
    %cst_23 = arith.constant 8.000000e+00 : f32
    %58 = arith.divf %57, %cst_23 : f32
    %cst_24 = arith.constant 2.000000e-01 : f32
    %59 = vector.broadcast %cst_24 : f32 to vector<8x8xf32>
    %60 = arith.addf %59, %27 : vector<8x8xf32>
    %cst_25 = arith.constant 0.000000e+00 : f32
    %61 = vector.broadcast %cst_25 : f32 to vector<8x8xf32>
    %cst_26 = arith.constant 0.000000e+00 : f32
    %62 = vector.broadcast %cst_26 : f32 to vector<8x8xf32>
    %63 = vector.extract_strided_slice %27 {offsets = [0, 0], sizes = [1, 8], strides = [1, 1]} : vector<8x8xf32> to vector<1x8xf32>
    %64 = vector.extract_strided_slice %40 {offsets = [0, 0], sizes = [1, 8], strides = [1, 1]} : vector<8x8xf32> to vector<1x8xf32>
    %65 = vector.broadcast %63 : vector<1x8xf32> to vector<8x8xf32>
    %66 = arith.subf %60, %65 : vector<8x8xf32>
    %cst_27 = arith.constant 0.000000e+00 : f32
    %67 = vector.broadcast %cst_27 : f32 to vector<8x8xf32>
    %68 = arith.maximumf %66, %67 : vector<8x8xf32>
    %69 = arith.mulf %38, %68 : vector<8x8xf32>
    %70 = vector.broadcast %64 : vector<1x8xf32> to vector<8x8xf32>
    %71 = arith.mulf %69, %70 : vector<8x8xf32>
    %72 = arith.addf %61, %71 : vector<8x8xf32>
    %cst_28 = arith.constant 0.000000e+00 : f32
    %73 = vector.broadcast %cst_28 : f32 to vector<8x8xf32>
    %74 = arith.cmpf ogt, %71, %73 : vector<8x8xf32>
    %75 = arith.extui %74 : vector<8x8xi1> to vector<8x8xi32>
    %76 = arith.sitofp %75 : vector<8x8xi32> to vector<8x8xf32>
    %77 = arith.addf %62, %76 : vector<8x8xf32>
    %78 = vector.extract_strided_slice %27 {offsets = [1, 0], sizes = [1, 8], strides = [1, 1]} : vector<8x8xf32> to vector<1x8xf32>
    %79 = vector.extract_strided_slice %40 {offsets = [1, 0], sizes = [1, 8], strides = [1, 1]} : vector<8x8xf32> to vector<1x8xf32>
    %80 = vector.broadcast %78 : vector<1x8xf32> to vector<8x8xf32>
    %81 = arith.subf %60, %80 : vector<8x8xf32>
    %cst_29 = arith.constant 0.000000e+00 : f32
    %82 = vector.broadcast %cst_29 : f32 to vector<8x8xf32>
    %83 = arith.maximumf %81, %82 : vector<8x8xf32>
    %84 = arith.mulf %38, %83 : vector<8x8xf32>
    %85 = vector.broadcast %79 : vector<1x8xf32> to vector<8x8xf32>
    %86 = arith.mulf %84, %85 : vector<8x8xf32>
    %87 = arith.addf %72, %86 : vector<8x8xf32>
    %cst_30 = arith.constant 0.000000e+00 : f32
    %88 = vector.broadcast %cst_30 : f32 to vector<8x8xf32>
    %89 = arith.cmpf ogt, %86, %88 : vector<8x8xf32>
    %90 = arith.extui %89 : vector<8x8xi1> to vector<8x8xi32>
    %91 = arith.sitofp %90 : vector<8x8xi32> to vector<8x8xf32>
    %92 = arith.addf %77, %91 : vector<8x8xf32>
    %93 = vector.extract_strided_slice %27 {offsets = [2, 0], sizes = [1, 8], strides = [1, 1]} : vector<8x8xf32> to vector<1x8xf32>
    %94 = vector.extract_strided_slice %40 {offsets = [2, 0], sizes = [1, 8], strides = [1, 1]} : vector<8x8xf32> to vector<1x8xf32>
    %95 = vector.broadcast %93 : vector<1x8xf32> to vector<8x8xf32>
    %96 = arith.subf %60, %95 : vector<8x8xf32>
    %cst_31 = arith.constant 0.000000e+00 : f32
    %97 = vector.broadcast %cst_31 : f32 to vector<8x8xf32>
    %98 = arith.maximumf %96, %97 : vector<8x8xf32>
    %99 = arith.mulf %38, %98 : vector<8x8xf32>
    %100 = vector.broadcast %94 : vector<1x8xf32> to vector<8x8xf32>
    %101 = arith.mulf %99, %100 : vector<8x8xf32>
    %102 = arith.addf %87, %101 : vector<8x8xf32>
    %cst_32 = arith.constant 0.000000e+00 : f32
    %103 = vector.broadcast %cst_32 : f32 to vector<8x8xf32>
    %104 = arith.cmpf ogt, %101, %103 : vector<8x8xf32>
    %105 = arith.extui %104 : vector<8x8xi1> to vector<8x8xi32>
    %106 = arith.sitofp %105 : vector<8x8xi32> to vector<8x8xf32>
    %107 = arith.addf %92, %106 : vector<8x8xf32>
    %108 = vector.extract_strided_slice %27 {offsets = [3, 0], sizes = [1, 8], strides = [1, 1]} : vector<8x8xf32> to vector<1x8xf32>
    %109 = vector.extract_strided_slice %40 {offsets = [3, 0], sizes = [1, 8], strides = [1, 1]} : vector<8x8xf32> to vector<1x8xf32>
    %110 = vector.broadcast %108 : vector<1x8xf32> to vector<8x8xf32>
    %111 = arith.subf %60, %110 : vector<8x8xf32>
    %cst_33 = arith.constant 0.000000e+00 : f32
    %112 = vector.broadcast %cst_33 : f32 to vector<8x8xf32>
    %113 = arith.maximumf %111, %112 : vector<8x8xf32>
    %114 = arith.mulf %38, %113 : vector<8x8xf32>
    %115 = vector.broadcast %109 : vector<1x8xf32> to vector<8x8xf32>
    %116 = arith.mulf %114, %115 : vector<8x8xf32>
    %117 = arith.addf %102, %116 : vector<8x8xf32>
    %cst_34 = arith.constant 0.000000e+00 : f32
    %118 = vector.broadcast %cst_34 : f32 to vector<8x8xf32>
    %119 = arith.cmpf ogt, %116, %118 : vector<8x8xf32>
    %120 = arith.extui %119 : vector<8x8xi1> to vector<8x8xi32>
    %121 = arith.sitofp %120 : vector<8x8xi32> to vector<8x8xf32>
    %122 = arith.addf %107, %121 : vector<8x8xf32>
    %123 = vector.extract_strided_slice %27 {offsets = [4, 0], sizes = [1, 8], strides = [1, 1]} : vector<8x8xf32> to vector<1x8xf32>
    %124 = vector.extract_strided_slice %40 {offsets = [4, 0], sizes = [1, 8], strides = [1, 1]} : vector<8x8xf32> to vector<1x8xf32>
    %125 = vector.broadcast %123 : vector<1x8xf32> to vector<8x8xf32>
    %126 = arith.subf %60, %125 : vector<8x8xf32>
    %cst_35 = arith.constant 0.000000e+00 : f32
    %127 = vector.broadcast %cst_35 : f32 to vector<8x8xf32>
    %128 = arith.maximumf %126, %127 : vector<8x8xf32>
    %129 = arith.mulf %38, %128 : vector<8x8xf32>
    %130 = vector.broadcast %124 : vector<1x8xf32> to vector<8x8xf32>
    %131 = arith.mulf %129, %130 : vector<8x8xf32>
    %132 = arith.addf %117, %131 : vector<8x8xf32>
    %cst_36 = arith.constant 0.000000e+00 : f32
    %133 = vector.broadcast %cst_36 : f32 to vector<8x8xf32>
    %134 = arith.cmpf ogt, %131, %133 : vector<8x8xf32>
    %135 = arith.extui %134 : vector<8x8xi1> to vector<8x8xi32>
    %136 = arith.sitofp %135 : vector<8x8xi32> to vector<8x8xf32>
    %137 = arith.addf %122, %136 : vector<8x8xf32>
    %138 = vector.extract_strided_slice %27 {offsets = [5, 0], sizes = [1, 8], strides = [1, 1]} : vector<8x8xf32> to vector<1x8xf32>
    %139 = vector.extract_strided_slice %40 {offsets = [5, 0], sizes = [1, 8], strides = [1, 1]} : vector<8x8xf32> to vector<1x8xf32>
    %140 = vector.broadcast %138 : vector<1x8xf32> to vector<8x8xf32>
    %141 = arith.subf %60, %140 : vector<8x8xf32>
    %cst_37 = arith.constant 0.000000e+00 : f32
    %142 = vector.broadcast %cst_37 : f32 to vector<8x8xf32>
    %143 = arith.maximumf %141, %142 : vector<8x8xf32>
    %144 = arith.mulf %38, %143 : vector<8x8xf32>
    %145 = vector.broadcast %139 : vector<1x8xf32> to vector<8x8xf32>
    %146 = arith.mulf %144, %145 : vector<8x8xf32>
    %147 = arith.addf %132, %146 : vector<8x8xf32>
    %cst_38 = arith.constant 0.000000e+00 : f32
    %148 = vector.broadcast %cst_38 : f32 to vector<8x8xf32>
    %149 = arith.cmpf ogt, %146, %148 : vector<8x8xf32>
    %150 = arith.extui %149 : vector<8x8xi1> to vector<8x8xi32>
    %151 = arith.sitofp %150 : vector<8x8xi32> to vector<8x8xf32>
    %152 = arith.addf %137, %151 : vector<8x8xf32>
    %153 = vector.extract_strided_slice %27 {offsets = [6, 0], sizes = [1, 8], strides = [1, 1]} : vector<8x8xf32> to vector<1x8xf32>
    %154 = vector.extract_strided_slice %40 {offsets = [6, 0], sizes = [1, 8], strides = [1, 1]} : vector<8x8xf32> to vector<1x8xf32>
    %155 = vector.broadcast %153 : vector<1x8xf32> to vector<8x8xf32>
    %156 = arith.subf %60, %155 : vector<8x8xf32>
    %cst_39 = arith.constant 0.000000e+00 : f32
    %157 = vector.broadcast %cst_39 : f32 to vector<8x8xf32>
    %158 = arith.maximumf %156, %157 : vector<8x8xf32>
    %159 = arith.mulf %38, %158 : vector<8x8xf32>
    %160 = vector.broadcast %154 : vector<1x8xf32> to vector<8x8xf32>
    %161 = arith.mulf %159, %160 : vector<8x8xf32>
    %162 = arith.addf %147, %161 : vector<8x8xf32>
    %cst_40 = arith.constant 0.000000e+00 : f32
    %163 = vector.broadcast %cst_40 : f32 to vector<8x8xf32>
    %164 = arith.cmpf ogt, %161, %163 : vector<8x8xf32>
    %165 = arith.extui %164 : vector<8x8xi1> to vector<8x8xi32>
    %166 = arith.sitofp %165 : vector<8x8xi32> to vector<8x8xf32>
    %167 = arith.addf %152, %166 : vector<8x8xf32>
    %168 = vector.extract_strided_slice %27 {offsets = [7, 0], sizes = [1, 8], strides = [1, 1]} : vector<8x8xf32> to vector<1x8xf32>
    %169 = vector.extract_strided_slice %40 {offsets = [7, 0], sizes = [1, 8], strides = [1, 1]} : vector<8x8xf32> to vector<1x8xf32>
    %170 = vector.broadcast %168 : vector<1x8xf32> to vector<8x8xf32>
    %171 = arith.subf %60, %170 : vector<8x8xf32>
    %cst_41 = arith.constant 0.000000e+00 : f32
    %172 = vector.broadcast %cst_41 : f32 to vector<8x8xf32>
    %173 = arith.maximumf %171, %172 : vector<8x8xf32>
    %174 = arith.mulf %38, %173 : vector<8x8xf32>
    %175 = vector.broadcast %169 : vector<1x8xf32> to vector<8x8xf32>
    %176 = arith.mulf %174, %175 : vector<8x8xf32>
    %177 = arith.addf %162, %176 : vector<8x8xf32>
    %cst_42 = arith.constant 0.000000e+00 : f32
    %178 = vector.broadcast %cst_42 : f32 to vector<8x8xf32>
    %179 = arith.cmpf ogt, %176, %178 : vector<8x8xf32>
    %180 = arith.extui %179 : vector<8x8xi1> to vector<8x8xi32>
    %181 = arith.sitofp %180 : vector<8x8xi32> to vector<8x8xf32>
    %182 = arith.addf %167, %181 : vector<8x8xf32>
    %183 = vector.shape_cast %177 : vector<8x8xf32> to vector<1x8x8xf32>
    %cst_43 = arith.constant dense<0.000000e+00> : vector<1xf32>
    %184 = vector.multi_reduction <add>, %183, %cst_43 [1, 2] : vector<1x8x8xf32> to vector<1xf32>
    %185 = vector.shape_cast %184 : vector<1xf32> to vector<1x1x1xf32>
    %186 = vector.extract %185[0, 0, 0] : f32 from vector<1x1x1xf32>
    %187 = vector.shape_cast %182 : vector<8x8xf32> to vector<1x8x8xf32>
    %cst_44 = arith.constant dense<0.000000e+00> : vector<1xf32>
    %188 = vector.multi_reduction <add>, %187, %cst_44 [1, 2] : vector<1x8x8xf32> to vector<1xf32>
    %189 = vector.shape_cast %188 : vector<1xf32> to vector<1x1x1xf32>
    %190 = vector.extract %189[0, 0, 0] : f32 from vector<1x1x1xf32>
    %cst_45 = arith.constant 0.000000e+00 : f32
    %191 = arith.cmpf ogt, %190, %cst_45 : f32
    %cst_46 = arith.constant 1.000000e+00 : f32
    %192 = arith.maximumf %190, %cst_46 : f32
    %193 = arith.divf %186, %192 : f32
    %cst_47 = arith.constant 0.000000e+00 : f32
    %194 = arith.select %191, %193, %cst_47 : f32
    %cst_48 = arith.constant dense<0xFF800000> : vector<8xf32>
    %195 = vector.multi_reduction <maximumf>, %6, %cst_48 [1] : vector<8x32xf32> to vector<8xf32>
    %196 = vector.shape_cast %195 : vector<8xf32> to vector<8x1xf32>
    %197 = vector.broadcast %196 : vector<8x1xf32> to vector<8x32xf32>
    %198 = arith.subf %6, %197 : vector<8x32xf32>
    %199 = math.exp %198 : vector<8x32xf32>
    %cst_49 = arith.constant dense<0.000000e+00> : vector<8xf32>
    %200 = vector.multi_reduction <add>, %199, %cst_49 [1] : vector<8x32xf32> to vector<8xf32>
    %201 = vector.shape_cast %200 : vector<8xf32> to vector<8x1xf32>
    %202 = math.log %201 : vector<8x1xf32>
    %203 = arith.addf %196, %202 : vector<8x1xf32>
    %204 = vector.broadcast %10 : vector<8x1xi32> to vector<8x32xi32>
    %205 = arith.cmpi eq, %3, %204 : vector<8x32xi32>
    %cst_50 = arith.constant 0.000000e+00 : f32
    %206 = vector.broadcast %cst_50 : f32 to vector<8x32xf32>
    %207 = arith.select %205, %6, %206 : vector<8x32xi1>, vector<8x32xf32>
    %cst_51 = arith.constant dense<0.000000e+00> : vector<8xf32>
    %208 = vector.multi_reduction <add>, %207, %cst_51 [1] : vector<8x32xf32> to vector<8xf32>
    %209 = vector.shape_cast %208 : vector<8xf32> to vector<8x1xf32>
    %210 = arith.subf %203, %209 : vector<8x1xf32>
    %211 = vector.shape_cast %210 : vector<8x1xf32> to vector<1x8x1xf32>
    %cst_52 = arith.constant dense<0.000000e+00> : vector<1xf32>
    %212 = vector.multi_reduction <add>, %211, %cst_52 [1, 2] : vector<1x8x1xf32> to vector<1xf32>
    %213 = vector.shape_cast %212 : vector<1xf32> to vector<1x1x1xf32>
    %214 = vector.extract %213[0, 0, 0] : f32 from vector<1x1x1xf32>
    %215 = vector.broadcast %196 : vector<8x1xf32> to vector<8x32xf32>
    %216 = arith.cmpf oeq, %6, %215 : vector<8x32xf32>
    %c32_i32 = arith.constant 32 : i32
    %217 = vector.broadcast %c32_i32 : i32 to vector<8x32xi32>
    %218 = arith.select %216, %3, %217 : vector<8x32xi1>, vector<8x32xi32>
    %cst_53 = arith.constant dense<2147483647> : vector<8xi32>
    %219 = vector.multi_reduction <minsi>, %218, %cst_53 [1] : vector<8x32xi32> to vector<8xi32>
    %220 = vector.shape_cast %219 : vector<8xi32> to vector<8x1xi32>
    %221 = arith.cmpi eq, %220, %10 : vector<8x1xi32>
    %222 = arith.extui %221 : vector<8x1xi1> to vector<8x1xi32>
    %223 = arith.sitofp %222 : vector<8x1xi32> to vector<8x1xf32>
    %224 = vector.shape_cast %223 : vector<8x1xf32> to vector<1x8x1xf32>
    %cst_54 = arith.constant dense<0.000000e+00> : vector<1xf32>
    %225 = vector.multi_reduction <add>, %224, %cst_54 [1, 2] : vector<1x8x1xf32> to vector<1xf32>
    %226 = vector.shape_cast %225 : vector<1xf32> to vector<1x1x1xf32>
    %227 = vector.extract %226[0, 0, 0] : f32 from vector<1x1x1xf32>
    %c0_i32 = arith.constant 0 : i32
    %228 = vector.broadcast %c0_i32 : i32 to vector<8x128xi32>
    %229 = arith.cmpi eq, %4, %228 : vector<8x128xi32>
    %cst_55 = arith.constant 0.000000e+00 : f32
    %230 = vector.broadcast %194 : f32 to vector<8x128xf32>
    %231 = vector.broadcast %cst_55 : f32 to vector<8x128xf32>
    %232 = arith.select %229, %230, %231 : vector<8x128xi1>, vector<8x128xf32>
    %c1_i32 = arith.constant 1 : i32
    %233 = vector.broadcast %c1_i32 : i32 to vector<8x128xi32>
    %234 = arith.cmpi eq, %4, %233 : vector<8x128xi32>
    %cst_56 = arith.constant 0.000000e+00 : f32
    %235 = vector.broadcast %58 : f32 to vector<8x128xf32>
    %236 = vector.broadcast %cst_56 : f32 to vector<8x128xf32>
    %237 = arith.select %234, %235, %236 : vector<8x128xi1>, vector<8x128xf32>
    %238 = arith.addf %232, %237 : vector<8x128xf32>
    %c2_i32 = arith.constant 2 : i32
    %239 = vector.broadcast %c2_i32 : i32 to vector<8x128xi32>
    %240 = arith.cmpi eq, %4, %239 : vector<8x128xi32>
    %cst_57 = arith.constant 0.000000e+00 : f32
    %241 = vector.broadcast %32 : f32 to vector<8x128xf32>
    %242 = vector.broadcast %cst_57 : f32 to vector<8x128xf32>
    %243 = arith.select %240, %241, %242 : vector<8x128xi1>, vector<8x128xf32>
    %244 = arith.addf %238, %243 : vector<8x128xf32>
    %c3_i32 = arith.constant 3 : i32
    %245 = vector.broadcast %c3_i32 : i32 to vector<8x128xi32>
    %246 = arith.cmpi eq, %4, %245 : vector<8x128xi32>
    %cst_58 = arith.constant 0.000000e+00 : f32
    %247 = vector.broadcast %190 : f32 to vector<8x128xf32>
    %248 = vector.broadcast %cst_58 : f32 to vector<8x128xf32>
    %249 = arith.select %246, %247, %248 : vector<8x128xi1>, vector<8x128xf32>
    %250 = arith.addf %244, %249 : vector<8x128xf32>
    %c4_i32 = arith.constant 4 : i32
    %251 = vector.broadcast %c4_i32 : i32 to vector<8x128xi32>
    %252 = arith.cmpi eq, %4, %251 : vector<8x128xi32>
    %cst_59 = arith.constant 0.000000e+00 : f32
    %253 = vector.broadcast %214 : f32 to vector<8x128xf32>
    %254 = vector.broadcast %cst_59 : f32 to vector<8x128xf32>
    %255 = arith.select %252, %253, %254 : vector<8x128xi1>, vector<8x128xf32>
    %256 = arith.addf %250, %255 : vector<8x128xf32>
    %c5_i32 = arith.constant 5 : i32
    %257 = vector.broadcast %c5_i32 : i32 to vector<8x128xi32>
    %258 = arith.cmpi eq, %4, %257 : vector<8x128xi32>
    %cst_60 = arith.constant 0.000000e+00 : f32
    %259 = vector.broadcast %227 : f32 to vector<8x128xf32>
    %260 = vector.broadcast %cst_60 : f32 to vector<8x128xf32>
    %261 = arith.select %258, %259, %260 : vector<8x128xi1>, vector<8x128xf32>
    %262 = arith.addf %256, %261 : vector<8x128xf32>
    %c0_61 = arith.constant 0 : index
    %c0_62 = arith.constant 0 : index
    %c0_63 = arith.constant 0 : index
    %263 = vector.load %arg4[%c0_61, %c0_62, %c0_63] : memref<4x8x128xf32, #tpu.memory_space<vmem>>, vector<1x8x128xf32>
    %264 = vector.shape_cast %263 : vector<1x8x128xf32> to vector<8x128xf32>
    %265 = vector.shape_cast %262 : vector<8x128xf32> to vector<1x8x128xf32>
    tpu.vector_store %arg4[%c0_61, %c0_62, %c0_63], %265 {strides = array<i32>} : memref<4x8x128xf32, #tpu.memory_space<vmem>>, vector<1x8x128xf32>,
    %c1 = arith.constant 1 : index
    %c0_64 = arith.constant 0 : index
    %c0_65 = arith.constant 0 : index
    %266 = vector.load %arg1[%c1, %c0_64, %c0_65] : memref<4x8x32xf32, #tpu.memory_space<vmem>>, vector<1x8x32xf32>
    %267 = vector.shape_cast %266 : vector<1x8x32xf32> to vector<8x32xf32>
    %c1_66 = arith.constant 1 : index
    %c0_67 = arith.constant 0 : index
    %c0_68 = arith.constant 0 : index
    %268 = vector.load %arg2[%c1_66, %c0_67, %c0_68] : memref<4x1x8xi32, #tpu.memory_space<vmem>>, vector<1x1x8xi32>
    %269 = vector.shape_cast %268 : vector<1x1x8xi32> to vector<1x8xi32>
    %c1_69 = arith.constant 1 : index
    %c0_70 = arith.constant 0 : index
    %c0_71 = arith.constant 0 : index
    %270 = vector.load %arg3[%c1_69, %c0_70, %c0_71] : memref<4x8x1xi32, #tpu.memory_space<vmem>>, vector<1x8x1xi32>
    %271 = vector.shape_cast %270 : vector<1x8x1xi32> to vector<8x1xi32>
    %cst_72 = arith.constant dense<0.000000e+00> : vector<8x8xf32>
    %272 = tpu.matmul %267, %267, %cst_72 {dimension_numbers = #tpu.dot_dimension_numbers<[1], [1], [0], [0], [0, 0, 1, 0], [], []>} : vector<8x32xf32>, vector<8x32xf32>, vector<8x8xf32> -> vector<8x8xf32>
    %273 = arith.mulf %267, %267 : vector<8x32xf32>
    %cst_73 = arith.constant dense<0.000000e+00> : vector<8xf32>
    %274 = vector.multi_reduction <add>, %273, %cst_73 [1] : vector<8x32xf32> to vector<8xf32>
    %275 = vector.shape_cast %274 : vector<8xf32> to vector<8x1xf32>
    %cst_74 = arith.constant 0.000000e+00 : f32
    %276 = vector.broadcast %cst_74 : f32 to vector<8x8xf32>
    %277 = arith.select %2, %272, %276 : vector<8x8xi1>, vector<8x8xf32>
    %cst_75 = arith.constant dense<0.000000e+00> : vector<8xf32>
    %278 = vector.multi_reduction <add>, %277, %cst_75 [0] : vector<8x8xf32> to vector<8xf32>
    %279 = vector.shape_cast %278 : vector<8xf32> to vector<1x8xf32>
    %280 = vector.broadcast %275 : vector<8x1xf32> to vector<8x8xf32>
    %281 = vector.broadcast %279 : vector<1x8xf32> to vector<8x8xf32>
    %282 = arith.addf %280, %281 : vector<8x8xf32>
    %cst_76 = arith.constant 2.000000e+00 : f32
    %283 = vector.broadcast %cst_76 : f32 to vector<8x8xf32>
    %284 = arith.mulf %283, %272 : vector<8x8xf32>
    %285 = arith.subf %282, %284 : vector<8x8xf32>
    %cst_77 = arith.constant 0.000000e+00 : f32
    %286 = vector.broadcast %cst_77 : f32 to vector<8x8xf32>
    %287 = arith.maximumf %285, %286 : vector<8x8xf32>
    %288 = math.sqrt %287 : vector<8x8xf32>
    %289 = vector.shape_cast %288 : vector<8x8xf32> to vector<1x8x8xf32>
    %cst_78 = arith.constant dense<0.000000e+00> : vector<1xf32>
    %290 = vector.multi_reduction <add>, %289, %cst_78 [1, 2] : vector<1x8x8xf32> to vector<1xf32>
    %291 = vector.shape_cast %290 : vector<1xf32> to vector<1x1x1xf32>
    %292 = vector.extract %291[0, 0, 0] : f32 from vector<1x1x1xf32>
    %cst_79 = arith.constant 6.400000e+01 : f32
    %293 = arith.divf %292, %cst_79 : f32
    %294 = vector.broadcast %271 : vector<8x1xi32> to vector<8x8xi32>
    %295 = vector.broadcast %269 : vector<1x8xi32> to vector<8x8xi32>
    %296 = arith.cmpi eq, %294, %295 : vector<8x8xi32>
    %cst_80 = arith.constant dense<true> : vector<8x8xi1>
    %297 = arith.xori %296, %cst_80 : vector<8x8xi1>
    %298 = arith.extui %296 : vector<8x8xi1> to vector<8x8xi32>
    %299 = arith.sitofp %298 : vector<8x8xi32> to vector<8x8xf32>
    %300 = arith.extui %297 : vector<8x8xi1> to vector<8x8xi32>
    %301 = arith.sitofp %300 : vector<8x8xi32> to vector<8x8xf32>
    %cst_81 = arith.constant 0xFF800000 : f32
    %302 = vector.broadcast %cst_81 : f32 to vector<8x8xf32>
    %303 = arith.select %296, %288, %302 : vector<8x8xi1>, vector<8x8xf32>
    %cst_82 = arith.constant dense<0xFF800000> : vector<8xf32>
    %304 = vector.multi_reduction <maximumf>, %303, %cst_82 [1] : vector<8x8xf32> to vector<8xf32>
    %305 = vector.shape_cast %304 : vector<8xf32> to vector<8x1xf32>
    %cst_83 = arith.constant 0x7F800000 : f32
    %306 = vector.broadcast %cst_83 : f32 to vector<8x8xf32>
    %307 = arith.select %297, %288, %306 : vector<8x8xi1>, vector<8x8xf32>
    %cst_84 = arith.constant dense<0x7F800000> : vector<8xf32>
    %308 = vector.multi_reduction <minimumf>, %307, %cst_84 [1] : vector<8x8xf32> to vector<8xf32>
    %309 = vector.shape_cast %308 : vector<8xf32> to vector<8x1xf32>
    %cst_85 = arith.constant 2.000000e-01 : f32
    %310 = vector.broadcast %cst_85 : f32 to vector<8x1xf32>
    %311 = arith.addf %310, %305 : vector<8x1xf32>
    %312 = arith.subf %311, %309 : vector<8x1xf32>
    %cst_86 = arith.constant 0.000000e+00 : f32
    %313 = vector.broadcast %cst_86 : f32 to vector<8x1xf32>
    %314 = arith.maximumf %312, %313 : vector<8x1xf32>
    %315 = vector.shape_cast %314 : vector<8x1xf32> to vector<1x8x1xf32>
    %cst_87 = arith.constant dense<0.000000e+00> : vector<1xf32>
    %316 = vector.multi_reduction <add>, %315, %cst_87 [1, 2] : vector<1x8x1xf32> to vector<1xf32>
    %317 = vector.shape_cast %316 : vector<1xf32> to vector<1x1x1xf32>
    %318 = vector.extract %317[0, 0, 0] : f32 from vector<1x1x1xf32>
    %cst_88 = arith.constant 8.000000e+00 : f32
    %319 = arith.divf %318, %cst_88 : f32
    %cst_89 = arith.constant 2.000000e-01 : f32
    %320 = vector.broadcast %cst_89 : f32 to vector<8x8xf32>
    %321 = arith.addf %320, %288 : vector<8x8xf32>
    %cst_90 = arith.constant 0.000000e+00 : f32
    %322 = vector.broadcast %cst_90 : f32 to vector<8x8xf32>
    %cst_91 = arith.constant 0.000000e+00 : f32
    %323 = vector.broadcast %cst_91 : f32 to vector<8x8xf32>
    %324 = vector.extract_strided_slice %288 {offsets = [0, 0], sizes = [1, 8], strides = [1, 1]} : vector<8x8xf32> to vector<1x8xf32>
    %325 = vector.extract_strided_slice %301 {offsets = [0, 0], sizes = [1, 8], strides = [1, 1]} : vector<8x8xf32> to vector<1x8xf32>
    %326 = vector.broadcast %324 : vector<1x8xf32> to vector<8x8xf32>
    %327 = arith.subf %321, %326 : vector<8x8xf32>
    %cst_92 = arith.constant 0.000000e+00 : f32
    %328 = vector.broadcast %cst_92 : f32 to vector<8x8xf32>
    %329 = arith.maximumf %327, %328 : vector<8x8xf32>
    %330 = arith.mulf %299, %329 : vector<8x8xf32>
    %331 = vector.broadcast %325 : vector<1x8xf32> to vector<8x8xf32>
    %332 = arith.mulf %330, %331 : vector<8x8xf32>
    %333 = arith.addf %322, %332 : vector<8x8xf32>
    %cst_93 = arith.constant 0.000000e+00 : f32
    %334 = vector.broadcast %cst_93 : f32 to vector<8x8xf32>
    %335 = arith.cmpf ogt, %332, %334 : vector<8x8xf32>
    %336 = arith.extui %335 : vector<8x8xi1> to vector<8x8xi32>
    %337 = arith.sitofp %336 : vector<8x8xi32> to vector<8x8xf32>
    %338 = arith.addf %323, %337 : vector<8x8xf32>
    %339 = vector.extract_strided_slice %288 {offsets = [1, 0], sizes = [1, 8], strides = [1, 1]} : vector<8x8xf32> to vector<1x8xf32>
    %340 = vector.extract_strided_slice %301 {offsets = [1, 0], sizes = [1, 8], strides = [1, 1]} : vector<8x8xf32> to vector<1x8xf32>
    %341 = vector.broadcast %339 : vector<1x8xf32> to vector<8x8xf32>
    %342 = arith.subf %321, %341 : vector<8x8xf32>
    %cst_94 = arith.constant 0.000000e+00 : f32
    %343 = vector.broadcast %cst_94 : f32 to vector<8x8xf32>
    %344 = arith.maximumf %342, %343 : vector<8x8xf32>
    %345 = arith.mulf %299, %344 : vector<8x8xf32>
    %346 = vector.broadcast %340 : vector<1x8xf32> to vector<8x8xf32>
    %347 = arith.mulf %345, %346 : vector<8x8xf32>
    %348 = arith.addf %333, %347 : vector<8x8xf32>
    %cst_95 = arith.constant 0.000000e+00 : f32
    %349 = vector.broadcast %cst_95 : f32 to vector<8x8xf32>
    %350 = arith.cmpf ogt, %347, %349 : vector<8x8xf32>
    %351 = arith.extui %350 : vector<8x8xi1> to vector<8x8xi32>
    %352 = arith.sitofp %351 : vector<8x8xi32> to vector<8x8xf32>
    %353 = arith.addf %338, %352 : vector<8x8xf32>
    %354 = vector.extract_strided_slice %288 {offsets = [2, 0], sizes = [1, 8], strides = [1, 1]} : vector<8x8xf32> to vector<1x8xf32>
    %355 = vector.extract_strided_slice %301 {offsets = [2, 0], sizes = [1, 8], strides = [1, 1]} : vector<8x8xf32> to vector<1x8xf32>
    %356 = vector.broadcast %354 : vector<1x8xf32> to vector<8x8xf32>
    %357 = arith.subf %321, %356 : vector<8x8xf32>
    %cst_96 = arith.constant 0.000000e+00 : f32
    %358 = vector.broadcast %cst_96 : f32 to vector<8x8xf32>
    %359 = arith.maximumf %357, %358 : vector<8x8xf32>
    %360 = arith.mulf %299, %359 : vector<8x8xf32>
    %361 = vector.broadcast %355 : vector<1x8xf32> to vector<8x8xf32>
    %362 = arith.mulf %360, %361 : vector<8x8xf32>
    %363 = arith.addf %348, %362 : vector<8x8xf32>
    %cst_97 = arith.constant 0.000000e+00 : f32
    %364 = vector.broadcast %cst_97 : f32 to vector<8x8xf32>
    %365 = arith.cmpf ogt, %362, %364 : vector<8x8xf32>
    %366 = arith.extui %365 : vector<8x8xi1> to vector<8x8xi32>
    %367 = arith.sitofp %366 : vector<8x8xi32> to vector<8x8xf32>
    %368 = arith.addf %353, %367 : vector<8x8xf32>
    %369 = vector.extract_strided_slice %288 {offsets = [3, 0], sizes = [1, 8], strides = [1, 1]} : vector<8x8xf32> to vector<1x8xf32>
    %370 = vector.extract_strided_slice %301 {offsets = [3, 0], sizes = [1, 8], strides = [1, 1]} : vector<8x8xf32> to vector<1x8xf32>
    %371 = vector.broadcast %369 : vector<1x8xf32> to vector<8x8xf32>
    %372 = arith.subf %321, %371 : vector<8x8xf32>
    %cst_98 = arith.constant 0.000000e+00 : f32
    %373 = vector.broadcast %cst_98 : f32 to vector<8x8xf32>
    %374 = arith.maximumf %372, %373 : vector<8x8xf32>
    %375 = arith.mulf %299, %374 : vector<8x8xf32>
    %376 = vector.broadcast %370 : vector<1x8xf32> to vector<8x8xf32>
    %377 = arith.mulf %375, %376 : vector<8x8xf32>
    %378 = arith.addf %363, %377 : vector<8x8xf32>
    %cst_99 = arith.constant 0.000000e+00 : f32
    %379 = vector.broadcast %cst_99 : f32 to vector<8x8xf32>
    %380 = arith.cmpf ogt, %377, %379 : vector<8x8xf32>
    %381 = arith.extui %380 : vector<8x8xi1> to vector<8x8xi32>
    %382 = arith.sitofp %381 : vector<8x8xi32> to vector<8x8xf32>
    %383 = arith.addf %368, %382 : vector<8x8xf32>
    %384 = vector.extract_strided_slice %288 {offsets = [4, 0], sizes = [1, 8], strides = [1, 1]} : vector<8x8xf32> to vector<1x8xf32>
    %385 = vector.extract_strided_slice %301 {offsets = [4, 0], sizes = [1, 8], strides = [1, 1]} : vector<8x8xf32> to vector<1x8xf32>
    %386 = vector.broadcast %384 : vector<1x8xf32> to vector<8x8xf32>
    %387 = arith.subf %321, %386 : vector<8x8xf32>
    %cst_100 = arith.constant 0.000000e+00 : f32
    %388 = vector.broadcast %cst_100 : f32 to vector<8x8xf32>
    %389 = arith.maximumf %387, %388 : vector<8x8xf32>
    %390 = arith.mulf %299, %389 : vector<8x8xf32>
    %391 = vector.broadcast %385 : vector<1x8xf32> to vector<8x8xf32>
    %392 = arith.mulf %390, %391 : vector<8x8xf32>
    %393 = arith.addf %378, %392 : vector<8x8xf32>
    %cst_101 = arith.constant 0.000000e+00 : f32
    %394 = vector.broadcast %cst_101 : f32 to vector<8x8xf32>
    %395 = arith.cmpf ogt, %392, %394 : vector<8x8xf32>
    %396 = arith.extui %395 : vector<8x8xi1> to vector<8x8xi32>
    %397 = arith.sitofp %396 : vector<8x8xi32> to vector<8x8xf32>
    %398 = arith.addf %383, %397 : vector<8x8xf32>
    %399 = vector.extract_strided_slice %288 {offsets = [5, 0], sizes = [1, 8], strides = [1, 1]} : vector<8x8xf32> to vector<1x8xf32>
    %400 = vector.extract_strided_slice %301 {offsets = [5, 0], sizes = [1, 8], strides = [1, 1]} : vector<8x8xf32> to vector<1x8xf32>
    %401 = vector.broadcast %399 : vector<1x8xf32> to vector<8x8xf32>
    %402 = arith.subf %321, %401 : vector<8x8xf32>
    %cst_102 = arith.constant 0.000000e+00 : f32
    %403 = vector.broadcast %cst_102 : f32 to vector<8x8xf32>
    %404 = arith.maximumf %402, %403 : vector<8x8xf32>
    %405 = arith.mulf %299, %404 : vector<8x8xf32>
    %406 = vector.broadcast %400 : vector<1x8xf32> to vector<8x8xf32>
    %407 = arith.mulf %405, %406 : vector<8x8xf32>
    %408 = arith.addf %393, %407 : vector<8x8xf32>
    %cst_103 = arith.constant 0.000000e+00 : f32
    %409 = vector.broadcast %cst_103 : f32 to vector<8x8xf32>
    %410 = arith.cmpf ogt, %407, %409 : vector<8x8xf32>
    %411 = arith.extui %410 : vector<8x8xi1> to vector<8x8xi32>
    %412 = arith.sitofp %411 : vector<8x8xi32> to vector<8x8xf32>
    %413 = arith.addf %398, %412 : vector<8x8xf32>
    %414 = vector.extract_strided_slice %288 {offsets = [6, 0], sizes = [1, 8], strides = [1, 1]} : vector<8x8xf32> to vector<1x8xf32>
    %415 = vector.extract_strided_slice %301 {offsets = [6, 0], sizes = [1, 8], strides = [1, 1]} : vector<8x8xf32> to vector<1x8xf32>
    %416 = vector.broadcast %414 : vector<1x8xf32> to vector<8x8xf32>
    %417 = arith.subf %321, %416 : vector<8x8xf32>
    %cst_104 = arith.constant 0.000000e+00 : f32
    %418 = vector.broadcast %cst_104 : f32 to vector<8x8xf32>
    %419 = arith.maximumf %417, %418 : vector<8x8xf32>
    %420 = arith.mulf %299, %419 : vector<8x8xf32>
    %421 = vector.broadcast %415 : vector<1x8xf32> to vector<8x8xf32>
    %422 = arith.mulf %420, %421 : vector<8x8xf32>
    %423 = arith.addf %408, %422 : vector<8x8xf32>
    %cst_105 = arith.constant 0.000000e+00 : f32
    %424 = vector.broadcast %cst_105 : f32 to vector<8x8xf32>
    %425 = arith.cmpf ogt, %422, %424 : vector<8x8xf32>
    %426 = arith.extui %425 : vector<8x8xi1> to vector<8x8xi32>
    %427 = arith.sitofp %426 : vector<8x8xi32> to vector<8x8xf32>
    %428 = arith.addf %413, %427 : vector<8x8xf32>
    %429 = vector.extract_strided_slice %288 {offsets = [7, 0], sizes = [1, 8], strides = [1, 1]} : vector<8x8xf32> to vector<1x8xf32>
    %430 = vector.extract_strided_slice %301 {offsets = [7, 0], sizes = [1, 8], strides = [1, 1]} : vector<8x8xf32> to vector<1x8xf32>
    %431 = vector.broadcast %429 : vector<1x8xf32> to vector<8x8xf32>
    %432 = arith.subf %321, %431 : vector<8x8xf32>
    %cst_106 = arith.constant 0.000000e+00 : f32
    %433 = vector.broadcast %cst_106 : f32 to vector<8x8xf32>
    %434 = arith.maximumf %432, %433 : vector<8x8xf32>
    %435 = arith.mulf %299, %434 : vector<8x8xf32>
    %436 = vector.broadcast %430 : vector<1x8xf32> to vector<8x8xf32>
    %437 = arith.mulf %435, %436 : vector<8x8xf32>
    %438 = arith.addf %423, %437 : vector<8x8xf32>
    %cst_107 = arith.constant 0.000000e+00 : f32
    %439 = vector.broadcast %cst_107 : f32 to vector<8x8xf32>
    %440 = arith.cmpf ogt, %437, %439 : vector<8x8xf32>
    %441 = arith.extui %440 : vector<8x8xi1> to vector<8x8xi32>
    %442 = arith.sitofp %441 : vector<8x8xi32> to vector<8x8xf32>
    %443 = arith.addf %428, %442 : vector<8x8xf32>
    %444 = vector.shape_cast %438 : vector<8x8xf32> to vector<1x8x8xf32>
    %cst_108 = arith.constant dense<0.000000e+00> : vector<1xf32>
    %445 = vector.multi_reduction <add>, %444, %cst_108 [1, 2] : vector<1x8x8xf32> to vector<1xf32>
    %446 = vector.shape_cast %445 : vector<1xf32> to vector<1x1x1xf32>
    %447 = vector.extract %446[0, 0, 0] : f32 from vector<1x1x1xf32>
    %448 = vector.shape_cast %443 : vector<8x8xf32> to vector<1x8x8xf32>
    %cst_109 = arith.constant dense<0.000000e+00> : vector<1xf32>
    %449 = vector.multi_reduction <add>, %448, %cst_109 [1, 2] : vector<1x8x8xf32> to vector<1xf32>
    %450 = vector.shape_cast %449 : vector<1xf32> to vector<1x1x1xf32>
    %451 = vector.extract %450[0, 0, 0] : f32 from vector<1x1x1xf32>
    %cst_110 = arith.constant 0.000000e+00 : f32
    %452 = arith.cmpf ogt, %451, %cst_110 : f32
    %cst_111 = arith.constant 1.000000e+00 : f32
    %453 = arith.maximumf %451, %cst_111 : f32
    %454 = arith.divf %447, %453 : f32
    %cst_112 = arith.constant 0.000000e+00 : f32
    %455 = arith.select %452, %454, %cst_112 : f32
    %cst_113 = arith.constant dense<0xFF800000> : vector<8xf32>
    %456 = vector.multi_reduction <maximumf>, %267, %cst_113 [1] : vector<8x32xf32> to vector<8xf32>
    %457 = vector.shape_cast %456 : vector<8xf32> to vector<8x1xf32>
    %458 = vector.broadcast %457 : vector<8x1xf32> to vector<8x32xf32>
    %459 = arith.subf %267, %458 : vector<8x32xf32>
    %460 = math.exp %459 : vector<8x32xf32>
    %cst_114 = arith.constant dense<0.000000e+00> : vector<8xf32>
    %461 = vector.multi_reduction <add>, %460, %cst_114 [1] : vector<8x32xf32> to vector<8xf32>
    %462 = vector.shape_cast %461 : vector<8xf32> to vector<8x1xf32>
    %463 = math.log %462 : vector<8x1xf32>
    %464 = arith.addf %457, %463 : vector<8x1xf32>
    %465 = vector.broadcast %271 : vector<8x1xi32> to vector<8x32xi32>
    %466 = arith.cmpi eq, %3, %465 : vector<8x32xi32>
    %cst_115 = arith.constant 0.000000e+00 : f32
    %467 = vector.broadcast %cst_115 : f32 to vector<8x32xf32>
    %468 = arith.select %466, %267, %467 : vector<8x32xi1>, vector<8x32xf32>
    %cst_116 = arith.constant dense<0.000000e+00> : vector<8xf32>
    %469 = vector.multi_reduction <add>, %468, %cst_116 [1] : vector<8x32xf32> to vector<8xf32>
    %470 = vector.shape_cast %469 : vector<8xf32> to vector<8x1xf32>
    %471 = arith.subf %464, %470 : vector<8x1xf32>
    %472 = vector.shape_cast %471 : vector<8x1xf32> to vector<1x8x1xf32>
    %cst_117 = arith.constant dense<0.000000e+00> : vector<1xf32>
    %473 = vector.multi_reduction <add>, %472, %cst_117 [1, 2] : vector<1x8x1xf32> to vector<1xf32>
    %474 = vector.shape_cast %473 : vector<1xf32> to vector<1x1x1xf32>
    %475 = vector.extract %474[0, 0, 0] : f32 from vector<1x1x1xf32>
    %476 = vector.broadcast %457 : vector<8x1xf32> to vector<8x32xf32>
    %477 = arith.cmpf oeq, %267, %476 : vector<8x32xf32>
    %c32_i32_118 = arith.constant 32 : i32
    %478 = vector.broadcast %c32_i32_118 : i32 to vector<8x32xi32>
    %479 = arith.select %477, %3, %478 : vector<8x32xi1>, vector<8x32xi32>
    %cst_119 = arith.constant dense<2147483647> : vector<8xi32>
    %480 = vector.multi_reduction <minsi>, %479, %cst_119 [1] : vector<8x32xi32> to vector<8xi32>
    %481 = vector.shape_cast %480 : vector<8xi32> to vector<8x1xi32>
    %482 = arith.cmpi eq, %481, %271 : vector<8x1xi32>
    %483 = arith.extui %482 : vector<8x1xi1> to vector<8x1xi32>
    %484 = arith.sitofp %483 : vector<8x1xi32> to vector<8x1xf32>
    %485 = vector.shape_cast %484 : vector<8x1xf32> to vector<1x8x1xf32>
    %cst_120 = arith.constant dense<0.000000e+00> : vector<1xf32>
    %486 = vector.multi_reduction <add>, %485, %cst_120 [1, 2] : vector<1x8x1xf32> to vector<1xf32>
    %487 = vector.shape_cast %486 : vector<1xf32> to vector<1x1x1xf32>
    %488 = vector.extract %487[0, 0, 0] : f32 from vector<1x1x1xf32>
    %c0_i32_121 = arith.constant 0 : i32
    %489 = vector.broadcast %c0_i32_121 : i32 to vector<8x128xi32>
    %490 = arith.cmpi eq, %4, %489 : vector<8x128xi32>
    %cst_122 = arith.constant 0.000000e+00 : f32
    %491 = vector.broadcast %455 : f32 to vector<8x128xf32>
    %492 = vector.broadcast %cst_122 : f32 to vector<8x128xf32>
    %493 = arith.select %490, %491, %492 : vector<8x128xi1>, vector<8x128xf32>
    %c1_i32_123 = arith.constant 1 : i32
    %494 = vector.broadcast %c1_i32_123 : i32 to vector<8x128xi32>
    %495 = arith.cmpi eq, %4, %494 : vector<8x128xi32>
    %cst_124 = arith.constant 0.000000e+00 : f32
    %496 = vector.broadcast %319 : f32 to vector<8x128xf32>
    %497 = vector.broadcast %cst_124 : f32 to vector<8x128xf32>
    %498 = arith.select %495, %496, %497 : vector<8x128xi1>, vector<8x128xf32>
    %499 = arith.addf %493, %498 : vector<8x128xf32>
    %c2_i32_125 = arith.constant 2 : i32
    %500 = vector.broadcast %c2_i32_125 : i32 to vector<8x128xi32>
    %501 = arith.cmpi eq, %4, %500 : vector<8x128xi32>
    %cst_126 = arith.constant 0.000000e+00 : f32
    %502 = vector.broadcast %293 : f32 to vector<8x128xf32>
    %503 = vector.broadcast %cst_126 : f32 to vector<8x128xf32>
    %504 = arith.select %501, %502, %503 : vector<8x128xi1>, vector<8x128xf32>
    %505 = arith.addf %499, %504 : vector<8x128xf32>
    %c3_i32_127 = arith.constant 3 : i32
    %506 = vector.broadcast %c3_i32_127 : i32 to vector<8x128xi32>
    %507 = arith.cmpi eq, %4, %506 : vector<8x128xi32>
    %cst_128 = arith.constant 0.000000e+00 : f32
    %508 = vector.broadcast %451 : f32 to vector<8x128xf32>
    %509 = vector.broadcast %cst_128 : f32 to vector<8x128xf32>
    %510 = arith.select %507, %508, %509 : vector<8x128xi1>, vector<8x128xf32>
    %511 = arith.addf %505, %510 : vector<8x128xf32>
    %c4_i32_129 = arith.constant 4 : i32
    %512 = vector.broadcast %c4_i32_129 : i32 to vector<8x128xi32>
    %513 = arith.cmpi eq, %4, %512 : vector<8x128xi32>
    %cst_130 = arith.constant 0.000000e+00 : f32
    %514 = vector.broadcast %475 : f32 to vector<8x128xf32>
    %515 = vector.broadcast %cst_130 : f32 to vector<8x128xf32>
    %516 = arith.select %513, %514, %515 : vector<8x128xi1>, vector<8x128xf32>
    %517 = arith.addf %511, %516 : vector<8x128xf32>
    %c5_i32_131 = arith.constant 5 : i32
    %518 = vector.broadcast %c5_i32_131 : i32 to vector<8x128xi32>
    %519 = arith.cmpi eq, %4, %518 : vector<8x128xi32>
    %cst_132 = arith.constant 0.000000e+00 : f32
    %520 = vector.broadcast %488 : f32 to vector<8x128xf32>
    %521 = vector.broadcast %cst_132 : f32 to vector<8x128xf32>
    %522 = arith.select %519, %520, %521 : vector<8x128xi1>, vector<8x128xf32>
    %523 = arith.addf %517, %522 : vector<8x128xf32>
    %c1_133 = arith.constant 1 : index
    %c0_134 = arith.constant 0 : index
    %c0_135 = arith.constant 0 : index
    %524 = vector.load %arg4[%c1_133, %c0_134, %c0_135] : memref<4x8x128xf32, #tpu.memory_space<vmem>>, vector<1x8x128xf32>
    %525 = vector.shape_cast %524 : vector<1x8x128xf32> to vector<8x128xf32>
    %526 = vector.shape_cast %523 : vector<8x128xf32> to vector<1x8x128xf32>
    tpu.vector_store %arg4[%c1_133, %c0_134, %c0_135], %526 {strides = array<i32>} : memref<4x8x128xf32, #tpu.memory_space<vmem>>, vector<1x8x128xf32>,
    %c2 = arith.constant 2 : index
    %c0_136 = arith.constant 0 : index
    %c0_137 = arith.constant 0 : index
    %527 = vector.load %arg1[%c2, %c0_136, %c0_137] : memref<4x8x32xf32, #tpu.memory_space<vmem>>, vector<1x8x32xf32>
    %528 = vector.shape_cast %527 : vector<1x8x32xf32> to vector<8x32xf32>
    %c2_138 = arith.constant 2 : index
    %c0_139 = arith.constant 0 : index
    %c0_140 = arith.constant 0 : index
    %529 = vector.load %arg2[%c2_138, %c0_139, %c0_140] : memref<4x1x8xi32, #tpu.memory_space<vmem>>, vector<1x1x8xi32>
    %530 = vector.shape_cast %529 : vector<1x1x8xi32> to vector<1x8xi32>
    %c2_141 = arith.constant 2 : index
    %c0_142 = arith.constant 0 : index
    %c0_143 = arith.constant 0 : index
    %531 = vector.load %arg3[%c2_141, %c0_142, %c0_143] : memref<4x8x1xi32, #tpu.memory_space<vmem>>, vector<1x8x1xi32>
    %532 = vector.shape_cast %531 : vector<1x8x1xi32> to vector<8x1xi32>
    %cst_144 = arith.constant dense<0.000000e+00> : vector<8x8xf32>
    %533 = tpu.matmul %528, %528, %cst_144 {dimension_numbers = #tpu.dot_dimension_numbers<[1], [1], [0], [0], [0, 0, 1, 0], [], []>} : vector<8x32xf32>, vector<8x32xf32>, vector<8x8xf32> -> vector<8x8xf32>
    %534 = arith.mulf %528, %528 : vector<8x32xf32>
    %cst_145 = arith.constant dense<0.000000e+00> : vector<8xf32>
    %535 = vector.multi_reduction <add>, %534, %cst_145 [1] : vector<8x32xf32> to vector<8xf32>
    %536 = vector.shape_cast %535 : vector<8xf32> to vector<8x1xf32>
    %cst_146 = arith.constant 0.000000e+00 : f32
    %537 = vector.broadcast %cst_146 : f32 to vector<8x8xf32>
    %538 = arith.select %2, %533, %537 : vector<8x8xi1>, vector<8x8xf32>
    %cst_147 = arith.constant dense<0.000000e+00> : vector<8xf32>
    %539 = vector.multi_reduction <add>, %538, %cst_147 [0] : vector<8x8xf32> to vector<8xf32>
    %540 = vector.shape_cast %539 : vector<8xf32> to vector<1x8xf32>
    %541 = vector.broadcast %536 : vector<8x1xf32> to vector<8x8xf32>
    %542 = vector.broadcast %540 : vector<1x8xf32> to vector<8x8xf32>
    %543 = arith.addf %541, %542 : vector<8x8xf32>
    %cst_148 = arith.constant 2.000000e+00 : f32
    %544 = vector.broadcast %cst_148 : f32 to vector<8x8xf32>
    %545 = arith.mulf %544, %533 : vector<8x8xf32>
    %546 = arith.subf %543, %545 : vector<8x8xf32>
    %cst_149 = arith.constant 0.000000e+00 : f32
    %547 = vector.broadcast %cst_149 : f32 to vector<8x8xf32>
    %548 = arith.maximumf %546, %547 : vector<8x8xf32>
    %549 = math.sqrt %548 : vector<8x8xf32>
    %550 = vector.shape_cast %549 : vector<8x8xf32> to vector<1x8x8xf32>
    %cst_150 = arith.constant dense<0.000000e+00> : vector<1xf32>
    %551 = vector.multi_reduction <add>, %550, %cst_150 [1, 2] : vector<1x8x8xf32> to vector<1xf32>
    %552 = vector.shape_cast %551 : vector<1xf32> to vector<1x1x1xf32>
    %553 = vector.extract %552[0, 0, 0] : f32 from vector<1x1x1xf32>
    %cst_151 = arith.constant 6.400000e+01 : f32
    %554 = arith.divf %553, %cst_151 : f32
    %555 = vector.broadcast %532 : vector<8x1xi32> to vector<8x8xi32>
    %556 = vector.broadcast %530 : vector<1x8xi32> to vector<8x8xi32>
    %557 = arith.cmpi eq, %555, %556 : vector<8x8xi32>
    %cst_152 = arith.constant dense<true> : vector<8x8xi1>
    %558 = arith.xori %557, %cst_152 : vector<8x8xi1>
    %559 = arith.extui %557 : vector<8x8xi1> to vector<8x8xi32>
    %560 = arith.sitofp %559 : vector<8x8xi32> to vector<8x8xf32>
    %561 = arith.extui %558 : vector<8x8xi1> to vector<8x8xi32>
    %562 = arith.sitofp %561 : vector<8x8xi32> to vector<8x8xf32>
    %cst_153 = arith.constant 0xFF800000 : f32
    %563 = vector.broadcast %cst_153 : f32 to vector<8x8xf32>
    %564 = arith.select %557, %549, %563 : vector<8x8xi1>, vector<8x8xf32>
    %cst_154 = arith.constant dense<0xFF800000> : vector<8xf32>
    %565 = vector.multi_reduction <maximumf>, %564, %cst_154 [1] : vector<8x8xf32> to vector<8xf32>
    %566 = vector.shape_cast %565 : vector<8xf32> to vector<8x1xf32>
    %cst_155 = arith.constant 0x7F800000 : f32
    %567 = vector.broadcast %cst_155 : f32 to vector<8x8xf32>
    %568 = arith.select %558, %549, %567 : vector<8x8xi1>, vector<8x8xf32>
    %cst_156 = arith.constant dense<0x7F800000> : vector<8xf32>
    %569 = vector.multi_reduction <minimumf>, %568, %cst_156 [1] : vector<8x8xf32> to vector<8xf32>
    %570 = vector.shape_cast %569 : vector<8xf32> to vector<8x1xf32>
    %cst_157 = arith.constant 2.000000e-01 : f32
    %571 = vector.broadcast %cst_157 : f32 to vector<8x1xf32>
    %572 = arith.addf %571, %566 : vector<8x1xf32>
    %573 = arith.subf %572, %570 : vector<8x1xf32>
    %cst_158 = arith.constant 0.000000e+00 : f32
    %574 = vector.broadcast %cst_158 : f32 to vector<8x1xf32>
    %575 = arith.maximumf %573, %574 : vector<8x1xf32>
    %576 = vector.shape_cast %575 : vector<8x1xf32> to vector<1x8x1xf32>
    %cst_159 = arith.constant dense<0.000000e+00> : vector<1xf32>
    %577 = vector.multi_reduction <add>, %576, %cst_159 [1, 2] : vector<1x8x1xf32> to vector<1xf32>
    %578 = vector.shape_cast %577 : vector<1xf32> to vector<1x1x1xf32>
    %579 = vector.extract %578[0, 0, 0] : f32 from vector<1x1x1xf32>
    %cst_160 = arith.constant 8.000000e+00 : f32
    %580 = arith.divf %579, %cst_160 : f32
    %cst_161 = arith.constant 2.000000e-01 : f32
    %581 = vector.broadcast %cst_161 : f32 to vector<8x8xf32>
    %582 = arith.addf %581, %549 : vector<8x8xf32>
    %cst_162 = arith.constant 0.000000e+00 : f32
    %583 = vector.broadcast %cst_162 : f32 to vector<8x8xf32>
    %cst_163 = arith.constant 0.000000e+00 : f32
    %584 = vector.broadcast %cst_163 : f32 to vector<8x8xf32>
    %585 = vector.extract_strided_slice %549 {offsets = [0, 0], sizes = [1, 8], strides = [1, 1]} : vector<8x8xf32> to vector<1x8xf32>
    %586 = vector.extract_strided_slice %562 {offsets = [0, 0], sizes = [1, 8], strides = [1, 1]} : vector<8x8xf32> to vector<1x8xf32>
    %587 = vector.broadcast %585 : vector<1x8xf32> to vector<8x8xf32>
    %588 = arith.subf %582, %587 : vector<8x8xf32>
    %cst_164 = arith.constant 0.000000e+00 : f32
    %589 = vector.broadcast %cst_164 : f32 to vector<8x8xf32>
    %590 = arith.maximumf %588, %589 : vector<8x8xf32>
    %591 = arith.mulf %560, %590 : vector<8x8xf32>
    %592 = vector.broadcast %586 : vector<1x8xf32> to vector<8x8xf32>
    %593 = arith.mulf %591, %592 : vector<8x8xf32>
    %594 = arith.addf %583, %593 : vector<8x8xf32>
    %cst_165 = arith.constant 0.000000e+00 : f32
    %595 = vector.broadcast %cst_165 : f32 to vector<8x8xf32>
    %596 = arith.cmpf ogt, %593, %595 : vector<8x8xf32>
    %597 = arith.extui %596 : vector<8x8xi1> to vector<8x8xi32>
    %598 = arith.sitofp %597 : vector<8x8xi32> to vector<8x8xf32>
    %599 = arith.addf %584, %598 : vector<8x8xf32>
    %600 = vector.extract_strided_slice %549 {offsets = [1, 0], sizes = [1, 8], strides = [1, 1]} : vector<8x8xf32> to vector<1x8xf32>
    %601 = vector.extract_strided_slice %562 {offsets = [1, 0], sizes = [1, 8], strides = [1, 1]} : vector<8x8xf32> to vector<1x8xf32>
    %602 = vector.broadcast %600 : vector<1x8xf32> to vector<8x8xf32>
    %603 = arith.subf %582, %602 : vector<8x8xf32>
    %cst_166 = arith.constant 0.000000e+00 : f32
    %604 = vector.broadcast %cst_166 : f32 to vector<8x8xf32>
    %605 = arith.maximumf %603, %604 : vector<8x8xf32>
    %606 = arith.mulf %560, %605 : vector<8x8xf32>
    %607 = vector.broadcast %601 : vector<1x8xf32> to vector<8x8xf32>
    %608 = arith.mulf %606, %607 : vector<8x8xf32>
    %609 = arith.addf %594, %608 : vector<8x8xf32>
    %cst_167 = arith.constant 0.000000e+00 : f32
    %610 = vector.broadcast %cst_167 : f32 to vector<8x8xf32>
    %611 = arith.cmpf ogt, %608, %610 : vector<8x8xf32>
    %612 = arith.extui %611 : vector<8x8xi1> to vector<8x8xi32>
    %613 = arith.sitofp %612 : vector<8x8xi32> to vector<8x8xf32>
    %614 = arith.addf %599, %613 : vector<8x8xf32>
    %615 = vector.extract_strided_slice %549 {offsets = [2, 0], sizes = [1, 8], strides = [1, 1]} : vector<8x8xf32> to vector<1x8xf32>
    %616 = vector.extract_strided_slice %562 {offsets = [2, 0], sizes = [1, 8], strides = [1, 1]} : vector<8x8xf32> to vector<1x8xf32>
    %617 = vector.broadcast %615 : vector<1x8xf32> to vector<8x8xf32>
    %618 = arith.subf %582, %617 : vector<8x8xf32>
    %cst_168 = arith.constant 0.000000e+00 : f32
    %619 = vector.broadcast %cst_168 : f32 to vector<8x8xf32>
    %620 = arith.maximumf %618, %619 : vector<8x8xf32>
    %621 = arith.mulf %560, %620 : vector<8x8xf32>
    %622 = vector.broadcast %616 : vector<1x8xf32> to vector<8x8xf32>
    %623 = arith.mulf %621, %622 : vector<8x8xf32>
    %624 = arith.addf %609, %623 : vector<8x8xf32>
    %cst_169 = arith.constant 0.000000e+00 : f32
    %625 = vector.broadcast %cst_169 : f32 to vector<8x8xf32>
    %626 = arith.cmpf ogt, %623, %625 : vector<8x8xf32>
    %627 = arith.extui %626 : vector<8x8xi1> to vector<8x8xi32>
    %628 = arith.sitofp %627 : vector<8x8xi32> to vector<8x8xf32>
    %629 = arith.addf %614, %628 : vector<8x8xf32>
    %630 = vector.extract_strided_slice %549 {offsets = [3, 0], sizes = [1, 8], strides = [1, 1]} : vector<8x8xf32> to vector<1x8xf32>
    %631 = vector.extract_strided_slice %562 {offsets = [3, 0], sizes = [1, 8], strides = [1, 1]} : vector<8x8xf32> to vector<1x8xf32>
    %632 = vector.broadcast %630 : vector<1x8xf32> to vector<8x8xf32>
    %633 = arith.subf %582, %632 : vector<8x8xf32>
    %cst_170 = arith.constant 0.000000e+00 : f32
    %634 = vector.broadcast %cst_170 : f32 to vector<8x8xf32>
    %635 = arith.maximumf %633, %634 : vector<8x8xf32>
    %636 = arith.mulf %560, %635 : vector<8x8xf32>
    %637 = vector.broadcast %631 : vector<1x8xf32> to vector<8x8xf32>
    %638 = arith.mulf %636, %637 : vector<8x8xf32>
    %639 = arith.addf %624, %638 : vector<8x8xf32>
    %cst_171 = arith.constant 0.000000e+00 : f32
    %640 = vector.broadcast %cst_171 : f32 to vector<8x8xf32>
    %641 = arith.cmpf ogt, %638, %640 : vector<8x8xf32>
    %642 = arith.extui %641 : vector<8x8xi1> to vector<8x8xi32>
    %643 = arith.sitofp %642 : vector<8x8xi32> to vector<8x8xf32>
    %644 = arith.addf %629, %643 : vector<8x8xf32>
    %645 = vector.extract_strided_slice %549 {offsets = [4, 0], sizes = [1, 8], strides = [1, 1]} : vector<8x8xf32> to vector<1x8xf32>
    %646 = vector.extract_strided_slice %562 {offsets = [4, 0], sizes = [1, 8], strides = [1, 1]} : vector<8x8xf32> to vector<1x8xf32>
    %647 = vector.broadcast %645 : vector<1x8xf32> to vector<8x8xf32>
    %648 = arith.subf %582, %647 : vector<8x8xf32>
    %cst_172 = arith.constant 0.000000e+00 : f32
    %649 = vector.broadcast %cst_172 : f32 to vector<8x8xf32>
    %650 = arith.maximumf %648, %649 : vector<8x8xf32>
    %651 = arith.mulf %560, %650 : vector<8x8xf32>
    %652 = vector.broadcast %646 : vector<1x8xf32> to vector<8x8xf32>
    %653 = arith.mulf %651, %652 : vector<8x8xf32>
    %654 = arith.addf %639, %653 : vector<8x8xf32>
    %cst_173 = arith.constant 0.000000e+00 : f32
    %655 = vector.broadcast %cst_173 : f32 to vector<8x8xf32>
    %656 = arith.cmpf ogt, %653, %655 : vector<8x8xf32>
    %657 = arith.extui %656 : vector<8x8xi1> to vector<8x8xi32>
    %658 = arith.sitofp %657 : vector<8x8xi32> to vector<8x8xf32>
    %659 = arith.addf %644, %658 : vector<8x8xf32>
    %660 = vector.extract_strided_slice %549 {offsets = [5, 0], sizes = [1, 8], strides = [1, 1]} : vector<8x8xf32> to vector<1x8xf32>
    %661 = vector.extract_strided_slice %562 {offsets = [5, 0], sizes = [1, 8], strides = [1, 1]} : vector<8x8xf32> to vector<1x8xf32>
    %662 = vector.broadcast %660 : vector<1x8xf32> to vector<8x8xf32>
    %663 = arith.subf %582, %662 : vector<8x8xf32>
    %cst_174 = arith.constant 0.000000e+00 : f32
    %664 = vector.broadcast %cst_174 : f32 to vector<8x8xf32>
    %665 = arith.maximumf %663, %664 : vector<8x8xf32>
    %666 = arith.mulf %560, %665 : vector<8x8xf32>
    %667 = vector.broadcast %661 : vector<1x8xf32> to vector<8x8xf32>
    %668 = arith.mulf %666, %667 : vector<8x8xf32>
    %669 = arith.addf %654, %668 : vector<8x8xf32>
    %cst_175 = arith.constant 0.000000e+00 : f32
    %670 = vector.broadcast %cst_175 : f32 to vector<8x8xf32>
    %671 = arith.cmpf ogt, %668, %670 : vector<8x8xf32>
    %672 = arith.extui %671 : vector<8x8xi1> to vector<8x8xi32>
    %673 = arith.sitofp %672 : vector<8x8xi32> to vector<8x8xf32>
    %674 = arith.addf %659, %673 : vector<8x8xf32>
    %675 = vector.extract_strided_slice %549 {offsets = [6, 0], sizes = [1, 8], strides = [1, 1]} : vector<8x8xf32> to vector<1x8xf32>
    %676 = vector.extract_strided_slice %562 {offsets = [6, 0], sizes = [1, 8], strides = [1, 1]} : vector<8x8xf32> to vector<1x8xf32>
    %677 = vector.broadcast %675 : vector<1x8xf32> to vector<8x8xf32>
    %678 = arith.subf %582, %677 : vector<8x8xf32>
    %cst_176 = arith.constant 0.000000e+00 : f32
    %679 = vector.broadcast %cst_176 : f32 to vector<8x8xf32>
    %680 = arith.maximumf %678, %679 : vector<8x8xf32>
    %681 = arith.mulf %560, %680 : vector<8x8xf32>
    %682 = vector.broadcast %676 : vector<1x8xf32> to vector<8x8xf32>
    %683 = arith.mulf %681, %682 : vector<8x8xf32>
    %684 = arith.addf %669, %683 : vector<8x8xf32>
    %cst_177 = arith.constant 0.000000e+00 : f32
    %685 = vector.broadcast %cst_177 : f32 to vector<8x8xf32>
    %686 = arith.cmpf ogt, %683, %685 : vector<8x8xf32>
    %687 = arith.extui %686 : vector<8x8xi1> to vector<8x8xi32>
    %688 = arith.sitofp %687 : vector<8x8xi32> to vector<8x8xf32>
    %689 = arith.addf %674, %688 : vector<8x8xf32>
    %690 = vector.extract_strided_slice %549 {offsets = [7, 0], sizes = [1, 8], strides = [1, 1]} : vector<8x8xf32> to vector<1x8xf32>
    %691 = vector.extract_strided_slice %562 {offsets = [7, 0], sizes = [1, 8], strides = [1, 1]} : vector<8x8xf32> to vector<1x8xf32>
    %692 = vector.broadcast %690 : vector<1x8xf32> to vector<8x8xf32>
    %693 = arith.subf %582, %692 : vector<8x8xf32>
    %cst_178 = arith.constant 0.000000e+00 : f32
    %694 = vector.broadcast %cst_178 : f32 to vector<8x8xf32>
    %695 = arith.maximumf %693, %694 : vector<8x8xf32>
    %696 = arith.mulf %560, %695 : vector<8x8xf32>
    %697 = vector.broadcast %691 : vector<1x8xf32> to vector<8x8xf32>
    %698 = arith.mulf %696, %697 : vector<8x8xf32>
    %699 = arith.addf %684, %698 : vector<8x8xf32>
    %cst_179 = arith.constant 0.000000e+00 : f32
    %700 = vector.broadcast %cst_179 : f32 to vector<8x8xf32>
    %701 = arith.cmpf ogt, %698, %700 : vector<8x8xf32>
    %702 = arith.extui %701 : vector<8x8xi1> to vector<8x8xi32>
    %703 = arith.sitofp %702 : vector<8x8xi32> to vector<8x8xf32>
    %704 = arith.addf %689, %703 : vector<8x8xf32>
    %705 = vector.shape_cast %699 : vector<8x8xf32> to vector<1x8x8xf32>
    %cst_180 = arith.constant dense<0.000000e+00> : vector<1xf32>
    %706 = vector.multi_reduction <add>, %705, %cst_180 [1, 2] : vector<1x8x8xf32> to vector<1xf32>
    %707 = vector.shape_cast %706 : vector<1xf32> to vector<1x1x1xf32>
    %708 = vector.extract %707[0, 0, 0] : f32 from vector<1x1x1xf32>
    %709 = vector.shape_cast %704 : vector<8x8xf32> to vector<1x8x8xf32>
    %cst_181 = arith.constant dense<0.000000e+00> : vector<1xf32>
    %710 = vector.multi_reduction <add>, %709, %cst_181 [1, 2] : vector<1x8x8xf32> to vector<1xf32>
    %711 = vector.shape_cast %710 : vector<1xf32> to vector<1x1x1xf32>
    %712 = vector.extract %711[0, 0, 0] : f32 from vector<1x1x1xf32>
    %cst_182 = arith.constant 0.000000e+00 : f32
    %713 = arith.cmpf ogt, %712, %cst_182 : f32
    %cst_183 = arith.constant 1.000000e+00 : f32
    %714 = arith.maximumf %712, %cst_183 : f32
    %715 = arith.divf %708, %714 : f32
    %cst_184 = arith.constant 0.000000e+00 : f32
    %716 = arith.select %713, %715, %cst_184 : f32
    %cst_185 = arith.constant dense<0xFF800000> : vector<8xf32>
    %717 = vector.multi_reduction <maximumf>, %528, %cst_185 [1] : vector<8x32xf32> to vector<8xf32>
    %718 = vector.shape_cast %717 : vector<8xf32> to vector<8x1xf32>
    %719 = vector.broadcast %718 : vector<8x1xf32> to vector<8x32xf32>
    %720 = arith.subf %528, %719 : vector<8x32xf32>
    %721 = math.exp %720 : vector<8x32xf32>
    %cst_186 = arith.constant dense<0.000000e+00> : vector<8xf32>
    %722 = vector.multi_reduction <add>, %721, %cst_186 [1] : vector<8x32xf32> to vector<8xf32>
    %723 = vector.shape_cast %722 : vector<8xf32> to vector<8x1xf32>
    %724 = math.log %723 : vector<8x1xf32>
    %725 = arith.addf %718, %724 : vector<8x1xf32>
    %726 = vector.broadcast %532 : vector<8x1xi32> to vector<8x32xi32>
    %727 = arith.cmpi eq, %3, %726 : vector<8x32xi32>
    %cst_187 = arith.constant 0.000000e+00 : f32
    %728 = vector.broadcast %cst_187 : f32 to vector<8x32xf32>
    %729 = arith.select %727, %528, %728 : vector<8x32xi1>, vector<8x32xf32>
    %cst_188 = arith.constant dense<0.000000e+00> : vector<8xf32>
    %730 = vector.multi_reduction <add>, %729, %cst_188 [1] : vector<8x32xf32> to vector<8xf32>
    %731 = vector.shape_cast %730 : vector<8xf32> to vector<8x1xf32>
    %732 = arith.subf %725, %731 : vector<8x1xf32>
    %733 = vector.shape_cast %732 : vector<8x1xf32> to vector<1x8x1xf32>
    %cst_189 = arith.constant dense<0.000000e+00> : vector<1xf32>
    %734 = vector.multi_reduction <add>, %733, %cst_189 [1, 2] : vector<1x8x1xf32> to vector<1xf32>
    %735 = vector.shape_cast %734 : vector<1xf32> to vector<1x1x1xf32>
    %736 = vector.extract %735[0, 0, 0] : f32 from vector<1x1x1xf32>
    %737 = vector.broadcast %718 : vector<8x1xf32> to vector<8x32xf32>
    %738 = arith.cmpf oeq, %528, %737 : vector<8x32xf32>
    %c32_i32_190 = arith.constant 32 : i32
    %739 = vector.broadcast %c32_i32_190 : i32 to vector<8x32xi32>
    %740 = arith.select %738, %3, %739 : vector<8x32xi1>, vector<8x32xi32>
    %cst_191 = arith.constant dense<2147483647> : vector<8xi32>
    %741 = vector.multi_reduction <minsi>, %740, %cst_191 [1] : vector<8x32xi32> to vector<8xi32>
    %742 = vector.shape_cast %741 : vector<8xi32> to vector<8x1xi32>
    %743 = arith.cmpi eq, %742, %532 : vector<8x1xi32>
    %744 = arith.extui %743 : vector<8x1xi1> to vector<8x1xi32>
    %745 = arith.sitofp %744 : vector<8x1xi32> to vector<8x1xf32>
    %746 = vector.shape_cast %745 : vector<8x1xf32> to vector<1x8x1xf32>
    %cst_192 = arith.constant dense<0.000000e+00> : vector<1xf32>
    %747 = vector.multi_reduction <add>, %746, %cst_192 [1, 2] : vector<1x8x1xf32> to vector<1xf32>
    %748 = vector.shape_cast %747 : vector<1xf32> to vector<1x1x1xf32>
    %749 = vector.extract %748[0, 0, 0] : f32 from vector<1x1x1xf32>
    %c0_i32_193 = arith.constant 0 : i32
    %750 = vector.broadcast %c0_i32_193 : i32 to vector<8x128xi32>
    %751 = arith.cmpi eq, %4, %750 : vector<8x128xi32>
    %cst_194 = arith.constant 0.000000e+00 : f32
    %752 = vector.broadcast %716 : f32 to vector<8x128xf32>
    %753 = vector.broadcast %cst_194 : f32 to vector<8x128xf32>
    %754 = arith.select %751, %752, %753 : vector<8x128xi1>, vector<8x128xf32>
    %c1_i32_195 = arith.constant 1 : i32
    %755 = vector.broadcast %c1_i32_195 : i32 to vector<8x128xi32>
    %756 = arith.cmpi eq, %4, %755 : vector<8x128xi32>
    %cst_196 = arith.constant 0.000000e+00 : f32
    %757 = vector.broadcast %580 : f32 to vector<8x128xf32>
    %758 = vector.broadcast %cst_196 : f32 to vector<8x128xf32>
    %759 = arith.select %756, %757, %758 : vector<8x128xi1>, vector<8x128xf32>
    %760 = arith.addf %754, %759 : vector<8x128xf32>
    %c2_i32_197 = arith.constant 2 : i32
    %761 = vector.broadcast %c2_i32_197 : i32 to vector<8x128xi32>
    %762 = arith.cmpi eq, %4, %761 : vector<8x128xi32>
    %cst_198 = arith.constant 0.000000e+00 : f32
    %763 = vector.broadcast %554 : f32 to vector<8x128xf32>
    %764 = vector.broadcast %cst_198 : f32 to vector<8x128xf32>
    %765 = arith.select %762, %763, %764 : vector<8x128xi1>, vector<8x128xf32>
    %766 = arith.addf %760, %765 : vector<8x128xf32>
    %c3_i32_199 = arith.constant 3 : i32
    %767 = vector.broadcast %c3_i32_199 : i32 to vector<8x128xi32>
    %768 = arith.cmpi eq, %4, %767 : vector<8x128xi32>
    %cst_200 = arith.constant 0.000000e+00 : f32
    %769 = vector.broadcast %712 : f32 to vector<8x128xf32>
    %770 = vector.broadcast %cst_200 : f32 to vector<8x128xf32>
    %771 = arith.select %768, %769, %770 : vector<8x128xi1>, vector<8x128xf32>
    %772 = arith.addf %766, %771 : vector<8x128xf32>
    %c4_i32_201 = arith.constant 4 : i32
    %773 = vector.broadcast %c4_i32_201 : i32 to vector<8x128xi32>
    %774 = arith.cmpi eq, %4, %773 : vector<8x128xi32>
    %cst_202 = arith.constant 0.000000e+00 : f32
    %775 = vector.broadcast %736 : f32 to vector<8x128xf32>
    %776 = vector.broadcast %cst_202 : f32 to vector<8x128xf32>
    %777 = arith.select %774, %775, %776 : vector<8x128xi1>, vector<8x128xf32>
    %778 = arith.addf %772, %777 : vector<8x128xf32>
    %c5_i32_203 = arith.constant 5 : i32
    %779 = vector.broadcast %c5_i32_203 : i32 to vector<8x128xi32>
    %780 = arith.cmpi eq, %4, %779 : vector<8x128xi32>
    %cst_204 = arith.constant 0.000000e+00 : f32
    %781 = vector.broadcast %749 : f32 to vector<8x128xf32>
    %782 = vector.broadcast %cst_204 : f32 to vector<8x128xf32>
    %783 = arith.select %780, %781, %782 : vector<8x128xi1>, vector<8x128xf32>
    %784 = arith.addf %778, %783 : vector<8x128xf32>
    %c2_205 = arith.constant 2 : index
    %c0_206 = arith.constant 0 : index
    %c0_207 = arith.constant 0 : index
    %785 = vector.load %arg4[%c2_205, %c0_206, %c0_207] : memref<4x8x128xf32, #tpu.memory_space<vmem>>, vector<1x8x128xf32>
    %786 = vector.shape_cast %785 : vector<1x8x128xf32> to vector<8x128xf32>
    %787 = vector.shape_cast %784 : vector<8x128xf32> to vector<1x8x128xf32>
    tpu.vector_store %arg4[%c2_205, %c0_206, %c0_207], %787 {strides = array<i32>} : memref<4x8x128xf32, #tpu.memory_space<vmem>>, vector<1x8x128xf32>,
    %c3 = arith.constant 3 : index
    %c0_208 = arith.constant 0 : index
    %c0_209 = arith.constant 0 : index
    %788 = vector.load %arg1[%c3, %c0_208, %c0_209] : memref<4x8x32xf32, #tpu.memory_space<vmem>>, vector<1x8x32xf32>
    %789 = vector.shape_cast %788 : vector<1x8x32xf32> to vector<8x32xf32>
    %c3_210 = arith.constant 3 : index
    %c0_211 = arith.constant 0 : index
    %c0_212 = arith.constant 0 : index
    %790 = vector.load %arg2[%c3_210, %c0_211, %c0_212] : memref<4x1x8xi32, #tpu.memory_space<vmem>>, vector<1x1x8xi32>
    %791 = vector.shape_cast %790 : vector<1x1x8xi32> to vector<1x8xi32>
    %c3_213 = arith.constant 3 : index
    %c0_214 = arith.constant 0 : index
    %c0_215 = arith.constant 0 : index
    %792 = vector.load %arg3[%c3_213, %c0_214, %c0_215] : memref<4x8x1xi32, #tpu.memory_space<vmem>>, vector<1x8x1xi32>
    %793 = vector.shape_cast %792 : vector<1x8x1xi32> to vector<8x1xi32>
    %cst_216 = arith.constant dense<0.000000e+00> : vector<8x8xf32>
    %794 = tpu.matmul %789, %789, %cst_216 {dimension_numbers = #tpu.dot_dimension_numbers<[1], [1], [0], [0], [0, 0, 1, 0], [], []>} : vector<8x32xf32>, vector<8x32xf32>, vector<8x8xf32> -> vector<8x8xf32>
    %795 = arith.mulf %789, %789 : vector<8x32xf32>
    %cst_217 = arith.constant dense<0.000000e+00> : vector<8xf32>
    %796 = vector.multi_reduction <add>, %795, %cst_217 [1] : vector<8x32xf32> to vector<8xf32>
    %797 = vector.shape_cast %796 : vector<8xf32> to vector<8x1xf32>
    %cst_218 = arith.constant 0.000000e+00 : f32
    %798 = vector.broadcast %cst_218 : f32 to vector<8x8xf32>
    %799 = arith.select %2, %794, %798 : vector<8x8xi1>, vector<8x8xf32>
    %cst_219 = arith.constant dense<0.000000e+00> : vector<8xf32>
    %800 = vector.multi_reduction <add>, %799, %cst_219 [0] : vector<8x8xf32> to vector<8xf32>
    %801 = vector.shape_cast %800 : vector<8xf32> to vector<1x8xf32>
    %802 = vector.broadcast %797 : vector<8x1xf32> to vector<8x8xf32>
    %803 = vector.broadcast %801 : vector<1x8xf32> to vector<8x8xf32>
    %804 = arith.addf %802, %803 : vector<8x8xf32>
    %cst_220 = arith.constant 2.000000e+00 : f32
    %805 = vector.broadcast %cst_220 : f32 to vector<8x8xf32>
    %806 = arith.mulf %805, %794 : vector<8x8xf32>
    %807 = arith.subf %804, %806 : vector<8x8xf32>
    %cst_221 = arith.constant 0.000000e+00 : f32
    %808 = vector.broadcast %cst_221 : f32 to vector<8x8xf32>
    %809 = arith.maximumf %807, %808 : vector<8x8xf32>
    %810 = math.sqrt %809 : vector<8x8xf32>
    %811 = vector.shape_cast %810 : vector<8x8xf32> to vector<1x8x8xf32>
    %cst_222 = arith.constant dense<0.000000e+00> : vector<1xf32>
    %812 = vector.multi_reduction <add>, %811, %cst_222 [1, 2] : vector<1x8x8xf32> to vector<1xf32>
    %813 = vector.shape_cast %812 : vector<1xf32> to vector<1x1x1xf32>
    %814 = vector.extract %813[0, 0, 0] : f32 from vector<1x1x1xf32>
    %cst_223 = arith.constant 6.400000e+01 : f32
    %815 = arith.divf %814, %cst_223 : f32
    %816 = vector.broadcast %793 : vector<8x1xi32> to vector<8x8xi32>
    %817 = vector.broadcast %791 : vector<1x8xi32> to vector<8x8xi32>
    %818 = arith.cmpi eq, %816, %817 : vector<8x8xi32>
    %cst_224 = arith.constant dense<true> : vector<8x8xi1>
    %819 = arith.xori %818, %cst_224 : vector<8x8xi1>
    %820 = arith.extui %818 : vector<8x8xi1> to vector<8x8xi32>
    %821 = arith.sitofp %820 : vector<8x8xi32> to vector<8x8xf32>
    %822 = arith.extui %819 : vector<8x8xi1> to vector<8x8xi32>
    %823 = arith.sitofp %822 : vector<8x8xi32> to vector<8x8xf32>
    %cst_225 = arith.constant 0xFF800000 : f32
    %824 = vector.broadcast %cst_225 : f32 to vector<8x8xf32>
    %825 = arith.select %818, %810, %824 : vector<8x8xi1>, vector<8x8xf32>
    %cst_226 = arith.constant dense<0xFF800000> : vector<8xf32>
    %826 = vector.multi_reduction <maximumf>, %825, %cst_226 [1] : vector<8x8xf32> to vector<8xf32>
    %827 = vector.shape_cast %826 : vector<8xf32> to vector<8x1xf32>
    %cst_227 = arith.constant 0x7F800000 : f32
    %828 = vector.broadcast %cst_227 : f32 to vector<8x8xf32>
    %829 = arith.select %819, %810, %828 : vector<8x8xi1>, vector<8x8xf32>
    %cst_228 = arith.constant dense<0x7F800000> : vector<8xf32>
    %830 = vector.multi_reduction <minimumf>, %829, %cst_228 [1] : vector<8x8xf32> to vector<8xf32>
    %831 = vector.shape_cast %830 : vector<8xf32> to vector<8x1xf32>
    %cst_229 = arith.constant 2.000000e-01 : f32
    %832 = vector.broadcast %cst_229 : f32 to vector<8x1xf32>
    %833 = arith.addf %832, %827 : vector<8x1xf32>
    %834 = arith.subf %833, %831 : vector<8x1xf32>
    %cst_230 = arith.constant 0.000000e+00 : f32
    %835 = vector.broadcast %cst_230 : f32 to vector<8x1xf32>
    %836 = arith.maximumf %834, %835 : vector<8x1xf32>
    %837 = vector.shape_cast %836 : vector<8x1xf32> to vector<1x8x1xf32>
    %cst_231 = arith.constant dense<0.000000e+00> : vector<1xf32>
    %838 = vector.multi_reduction <add>, %837, %cst_231 [1, 2] : vector<1x8x1xf32> to vector<1xf32>
    %839 = vector.shape_cast %838 : vector<1xf32> to vector<1x1x1xf32>
    %840 = vector.extract %839[0, 0, 0] : f32 from vector<1x1x1xf32>
    %cst_232 = arith.constant 8.000000e+00 : f32
    %841 = arith.divf %840, %cst_232 : f32
    %cst_233 = arith.constant 2.000000e-01 : f32
    %842 = vector.broadcast %cst_233 : f32 to vector<8x8xf32>
    %843 = arith.addf %842, %810 : vector<8x8xf32>
    %cst_234 = arith.constant 0.000000e+00 : f32
    %844 = vector.broadcast %cst_234 : f32 to vector<8x8xf32>
    %cst_235 = arith.constant 0.000000e+00 : f32
    %845 = vector.broadcast %cst_235 : f32 to vector<8x8xf32>
    %846 = vector.extract_strided_slice %810 {offsets = [0, 0], sizes = [1, 8], strides = [1, 1]} : vector<8x8xf32> to vector<1x8xf32>
    %847 = vector.extract_strided_slice %823 {offsets = [0, 0], sizes = [1, 8], strides = [1, 1]} : vector<8x8xf32> to vector<1x8xf32>
    %848 = vector.broadcast %846 : vector<1x8xf32> to vector<8x8xf32>
    %849 = arith.subf %843, %848 : vector<8x8xf32>
    %cst_236 = arith.constant 0.000000e+00 : f32
    %850 = vector.broadcast %cst_236 : f32 to vector<8x8xf32>
    %851 = arith.maximumf %849, %850 : vector<8x8xf32>
    %852 = arith.mulf %821, %851 : vector<8x8xf32>
    %853 = vector.broadcast %847 : vector<1x8xf32> to vector<8x8xf32>
    %854 = arith.mulf %852, %853 : vector<8x8xf32>
    %855 = arith.addf %844, %854 : vector<8x8xf32>
    %cst_237 = arith.constant 0.000000e+00 : f32
    %856 = vector.broadcast %cst_237 : f32 to vector<8x8xf32>
    %857 = arith.cmpf ogt, %854, %856 : vector<8x8xf32>
    %858 = arith.extui %857 : vector<8x8xi1> to vector<8x8xi32>
    %859 = arith.sitofp %858 : vector<8x8xi32> to vector<8x8xf32>
    %860 = arith.addf %845, %859 : vector<8x8xf32>
    %861 = vector.extract_strided_slice %810 {offsets = [1, 0], sizes = [1, 8], strides = [1, 1]} : vector<8x8xf32> to vector<1x8xf32>
    %862 = vector.extract_strided_slice %823 {offsets = [1, 0], sizes = [1, 8], strides = [1, 1]} : vector<8x8xf32> to vector<1x8xf32>
    %863 = vector.broadcast %861 : vector<1x8xf32> to vector<8x8xf32>
    %864 = arith.subf %843, %863 : vector<8x8xf32>
    %cst_238 = arith.constant 0.000000e+00 : f32
    %865 = vector.broadcast %cst_238 : f32 to vector<8x8xf32>
    %866 = arith.maximumf %864, %865 : vector<8x8xf32>
    %867 = arith.mulf %821, %866 : vector<8x8xf32>
    %868 = vector.broadcast %862 : vector<1x8xf32> to vector<8x8xf32>
    %869 = arith.mulf %867, %868 : vector<8x8xf32>
    %870 = arith.addf %855, %869 : vector<8x8xf32>
    %cst_239 = arith.constant 0.000000e+00 : f32
    %871 = vector.broadcast %cst_239 : f32 to vector<8x8xf32>
    %872 = arith.cmpf ogt, %869, %871 : vector<8x8xf32>
    %873 = arith.extui %872 : vector<8x8xi1> to vector<8x8xi32>
    %874 = arith.sitofp %873 : vector<8x8xi32> to vector<8x8xf32>
    %875 = arith.addf %860, %874 : vector<8x8xf32>
    %876 = vector.extract_strided_slice %810 {offsets = [2, 0], sizes = [1, 8], strides = [1, 1]} : vector<8x8xf32> to vector<1x8xf32>
    %877 = vector.extract_strided_slice %823 {offsets = [2, 0], sizes = [1, 8], strides = [1, 1]} : vector<8x8xf32> to vector<1x8xf32>
    %878 = vector.broadcast %876 : vector<1x8xf32> to vector<8x8xf32>
    %879 = arith.subf %843, %878 : vector<8x8xf32>
    %cst_240 = arith.constant 0.000000e+00 : f32
    %880 = vector.broadcast %cst_240 : f32 to vector<8x8xf32>
    %881 = arith.maximumf %879, %880 : vector<8x8xf32>
    %882 = arith.mulf %821, %881 : vector<8x8xf32>
    %883 = vector.broadcast %877 : vector<1x8xf32> to vector<8x8xf32>
    %884 = arith.mulf %882, %883 : vector<8x8xf32>
    %885 = arith.addf %870, %884 : vector<8x8xf32>
    %cst_241 = arith.constant 0.000000e+00 : f32
    %886 = vector.broadcast %cst_241 : f32 to vector<8x8xf32>
    %887 = arith.cmpf ogt, %884, %886 : vector<8x8xf32>
    %888 = arith.extui %887 : vector<8x8xi1> to vector<8x8xi32>
    %889 = arith.sitofp %888 : vector<8x8xi32> to vector<8x8xf32>
    %890 = arith.addf %875, %889 : vector<8x8xf32>
    %891 = vector.extract_strided_slice %810 {offsets = [3, 0], sizes = [1, 8], strides = [1, 1]} : vector<8x8xf32> to vector<1x8xf32>
    %892 = vector.extract_strided_slice %823 {offsets = [3, 0], sizes = [1, 8], strides = [1, 1]} : vector<8x8xf32> to vector<1x8xf32>
    %893 = vector.broadcast %891 : vector<1x8xf32> to vector<8x8xf32>
    %894 = arith.subf %843, %893 : vector<8x8xf32>
    %cst_242 = arith.constant 0.000000e+00 : f32
    %895 = vector.broadcast %cst_242 : f32 to vector<8x8xf32>
    %896 = arith.maximumf %894, %895 : vector<8x8xf32>
    %897 = arith.mulf %821, %896 : vector<8x8xf32>
    %898 = vector.broadcast %892 : vector<1x8xf32> to vector<8x8xf32>
    %899 = arith.mulf %897, %898 : vector<8x8xf32>
    %900 = arith.addf %885, %899 : vector<8x8xf32>
    %cst_243 = arith.constant 0.000000e+00 : f32
    %901 = vector.broadcast %cst_243 : f32 to vector<8x8xf32>
    %902 = arith.cmpf ogt, %899, %901 : vector<8x8xf32>
    %903 = arith.extui %902 : vector<8x8xi1> to vector<8x8xi32>
    %904 = arith.sitofp %903 : vector<8x8xi32> to vector<8x8xf32>
    %905 = arith.addf %890, %904 : vector<8x8xf32>
    %906 = vector.extract_strided_slice %810 {offsets = [4, 0], sizes = [1, 8], strides = [1, 1]} : vector<8x8xf32> to vector<1x8xf32>
    %907 = vector.extract_strided_slice %823 {offsets = [4, 0], sizes = [1, 8], strides = [1, 1]} : vector<8x8xf32> to vector<1x8xf32>
    %908 = vector.broadcast %906 : vector<1x8xf32> to vector<8x8xf32>
    %909 = arith.subf %843, %908 : vector<8x8xf32>
    %cst_244 = arith.constant 0.000000e+00 : f32
    %910 = vector.broadcast %cst_244 : f32 to vector<8x8xf32>
    %911 = arith.maximumf %909, %910 : vector<8x8xf32>
    %912 = arith.mulf %821, %911 : vector<8x8xf32>
    %913 = vector.broadcast %907 : vector<1x8xf32> to vector<8x8xf32>
    %914 = arith.mulf %912, %913 : vector<8x8xf32>
    %915 = arith.addf %900, %914 : vector<8x8xf32>
    %cst_245 = arith.constant 0.000000e+00 : f32
    %916 = vector.broadcast %cst_245 : f32 to vector<8x8xf32>
    %917 = arith.cmpf ogt, %914, %916 : vector<8x8xf32>
    %918 = arith.extui %917 : vector<8x8xi1> to vector<8x8xi32>
    %919 = arith.sitofp %918 : vector<8x8xi32> to vector<8x8xf32>
    %920 = arith.addf %905, %919 : vector<8x8xf32>
    %921 = vector.extract_strided_slice %810 {offsets = [5, 0], sizes = [1, 8], strides = [1, 1]} : vector<8x8xf32> to vector<1x8xf32>
    %922 = vector.extract_strided_slice %823 {offsets = [5, 0], sizes = [1, 8], strides = [1, 1]} : vector<8x8xf32> to vector<1x8xf32>
    %923 = vector.broadcast %921 : vector<1x8xf32> to vector<8x8xf32>
    %924 = arith.subf %843, %923 : vector<8x8xf32>
    %cst_246 = arith.constant 0.000000e+00 : f32
    %925 = vector.broadcast %cst_246 : f32 to vector<8x8xf32>
    %926 = arith.maximumf %924, %925 : vector<8x8xf32>
    %927 = arith.mulf %821, %926 : vector<8x8xf32>
    %928 = vector.broadcast %922 : vector<1x8xf32> to vector<8x8xf32>
    %929 = arith.mulf %927, %928 : vector<8x8xf32>
    %930 = arith.addf %915, %929 : vector<8x8xf32>
    %cst_247 = arith.constant 0.000000e+00 : f32
    %931 = vector.broadcast %cst_247 : f32 to vector<8x8xf32>
    %932 = arith.cmpf ogt, %929, %931 : vector<8x8xf32>
    %933 = arith.extui %932 : vector<8x8xi1> to vector<8x8xi32>
    %934 = arith.sitofp %933 : vector<8x8xi32> to vector<8x8xf32>
    %935 = arith.addf %920, %934 : vector<8x8xf32>
    %936 = vector.extract_strided_slice %810 {offsets = [6, 0], sizes = [1, 8], strides = [1, 1]} : vector<8x8xf32> to vector<1x8xf32>
    %937 = vector.extract_strided_slice %823 {offsets = [6, 0], sizes = [1, 8], strides = [1, 1]} : vector<8x8xf32> to vector<1x8xf32>
    %938 = vector.broadcast %936 : vector<1x8xf32> to vector<8x8xf32>
    %939 = arith.subf %843, %938 : vector<8x8xf32>
    %cst_248 = arith.constant 0.000000e+00 : f32
    %940 = vector.broadcast %cst_248 : f32 to vector<8x8xf32>
    %941 = arith.maximumf %939, %940 : vector<8x8xf32>
    %942 = arith.mulf %821, %941 : vector<8x8xf32>
    %943 = vector.broadcast %937 : vector<1x8xf32> to vector<8x8xf32>
    %944 = arith.mulf %942, %943 : vector<8x8xf32>
    %945 = arith.addf %930, %944 : vector<8x8xf32>
    %cst_249 = arith.constant 0.000000e+00 : f32
    %946 = vector.broadcast %cst_249 : f32 to vector<8x8xf32>
    %947 = arith.cmpf ogt, %944, %946 : vector<8x8xf32>
    %948 = arith.extui %947 : vector<8x8xi1> to vector<8x8xi32>
    %949 = arith.sitofp %948 : vector<8x8xi32> to vector<8x8xf32>
    %950 = arith.addf %935, %949 : vector<8x8xf32>
    %951 = vector.extract_strided_slice %810 {offsets = [7, 0], sizes = [1, 8], strides = [1, 1]} : vector<8x8xf32> to vector<1x8xf32>
    %952 = vector.extract_strided_slice %823 {offsets = [7, 0], sizes = [1, 8], strides = [1, 1]} : vector<8x8xf32> to vector<1x8xf32>
    %953 = vector.broadcast %951 : vector<1x8xf32> to vector<8x8xf32>
    %954 = arith.subf %843, %953 : vector<8x8xf32>
    %cst_250 = arith.constant 0.000000e+00 : f32
    %955 = vector.broadcast %cst_250 : f32 to vector<8x8xf32>
    %956 = arith.maximumf %954, %955 : vector<8x8xf32>
    %957 = arith.mulf %821, %956 : vector<8x8xf32>
    %958 = vector.broadcast %952 : vector<1x8xf32> to vector<8x8xf32>
    %959 = arith.mulf %957, %958 : vector<8x8xf32>
    %960 = arith.addf %945, %959 : vector<8x8xf32>
    %cst_251 = arith.constant 0.000000e+00 : f32
    %961 = vector.broadcast %cst_251 : f32 to vector<8x8xf32>
    %962 = arith.cmpf ogt, %959, %961 : vector<8x8xf32>
    %963 = arith.extui %962 : vector<8x8xi1> to vector<8x8xi32>
    %964 = arith.sitofp %963 : vector<8x8xi32> to vector<8x8xf32>
    %965 = arith.addf %950, %964 : vector<8x8xf32>
    %966 = vector.shape_cast %960 : vector<8x8xf32> to vector<1x8x8xf32>
    %cst_252 = arith.constant dense<0.000000e+00> : vector<1xf32>
    %967 = vector.multi_reduction <add>, %966, %cst_252 [1, 2] : vector<1x8x8xf32> to vector<1xf32>
    %968 = vector.shape_cast %967 : vector<1xf32> to vector<1x1x1xf32>
    %969 = vector.extract %968[0, 0, 0] : f32 from vector<1x1x1xf32>
    %970 = vector.shape_cast %965 : vector<8x8xf32> to vector<1x8x8xf32>
    %cst_253 = arith.constant dense<0.000000e+00> : vector<1xf32>
    %971 = vector.multi_reduction <add>, %970, %cst_253 [1, 2] : vector<1x8x8xf32> to vector<1xf32>
    %972 = vector.shape_cast %971 : vector<1xf32> to vector<1x1x1xf32>
    %973 = vector.extract %972[0, 0, 0] : f32 from vector<1x1x1xf32>
    %cst_254 = arith.constant 0.000000e+00 : f32
    %974 = arith.cmpf ogt, %973, %cst_254 : f32
    %cst_255 = arith.constant 1.000000e+00 : f32
    %975 = arith.maximumf %973, %cst_255 : f32
    %976 = arith.divf %969, %975 : f32
    %cst_256 = arith.constant 0.000000e+00 : f32
    %977 = arith.select %974, %976, %cst_256 : f32
    %cst_257 = arith.constant dense<0xFF800000> : vector<8xf32>
    %978 = vector.multi_reduction <maximumf>, %789, %cst_257 [1] : vector<8x32xf32> to vector<8xf32>
    %979 = vector.shape_cast %978 : vector<8xf32> to vector<8x1xf32>
    %980 = vector.broadcast %979 : vector<8x1xf32> to vector<8x32xf32>
    %981 = arith.subf %789, %980 : vector<8x32xf32>
    %982 = math.exp %981 : vector<8x32xf32>
    %cst_258 = arith.constant dense<0.000000e+00> : vector<8xf32>
    %983 = vector.multi_reduction <add>, %982, %cst_258 [1] : vector<8x32xf32> to vector<8xf32>
    %984 = vector.shape_cast %983 : vector<8xf32> to vector<8x1xf32>
    %985 = math.log %984 : vector<8x1xf32>
    %986 = arith.addf %979, %985 : vector<8x1xf32>
    %987 = vector.broadcast %793 : vector<8x1xi32> to vector<8x32xi32>
    %988 = arith.cmpi eq, %3, %987 : vector<8x32xi32>
    %cst_259 = arith.constant 0.000000e+00 : f32
    %989 = vector.broadcast %cst_259 : f32 to vector<8x32xf32>
    %990 = arith.select %988, %789, %989 : vector<8x32xi1>, vector<8x32xf32>
    %cst_260 = arith.constant dense<0.000000e+00> : vector<8xf32>
    %991 = vector.multi_reduction <add>, %990, %cst_260 [1] : vector<8x32xf32> to vector<8xf32>
    %992 = vector.shape_cast %991 : vector<8xf32> to vector<8x1xf32>
    %993 = arith.subf %986, %992 : vector<8x1xf32>
    %994 = vector.shape_cast %993 : vector<8x1xf32> to vector<1x8x1xf32>
    %cst_261 = arith.constant dense<0.000000e+00> : vector<1xf32>
    %995 = vector.multi_reduction <add>, %994, %cst_261 [1, 2] : vector<1x8x1xf32> to vector<1xf32>
    %996 = vector.shape_cast %995 : vector<1xf32> to vector<1x1x1xf32>
    %997 = vector.extract %996[0, 0, 0] : f32 from vector<1x1x1xf32>
    %998 = vector.broadcast %979 : vector<8x1xf32> to vector<8x32xf32>
    %999 = arith.cmpf oeq, %789, %998 : vector<8x32xf32>
    %c32_i32_262 = arith.constant 32 : i32
    %1000 = vector.broadcast %c32_i32_262 : i32 to vector<8x32xi32>
    %1001 = arith.select %999, %3, %1000 : vector<8x32xi1>, vector<8x32xi32>
    %cst_263 = arith.constant dense<2147483647> : vector<8xi32>
    %1002 = vector.multi_reduction <minsi>, %1001, %cst_263 [1] : vector<8x32xi32> to vector<8xi32>
    %1003 = vector.shape_cast %1002 : vector<8xi32> to vector<8x1xi32>
    %1004 = arith.cmpi eq, %1003, %793 : vector<8x1xi32>
    %1005 = arith.extui %1004 : vector<8x1xi1> to vector<8x1xi32>
    %1006 = arith.sitofp %1005 : vector<8x1xi32> to vector<8x1xf32>
    %1007 = vector.shape_cast %1006 : vector<8x1xf32> to vector<1x8x1xf32>
    %cst_264 = arith.constant dense<0.000000e+00> : vector<1xf32>
    %1008 = vector.multi_reduction <add>, %1007, %cst_264 [1, 2] : vector<1x8x1xf32> to vector<1xf32>
    %1009 = vector.shape_cast %1008 : vector<1xf32> to vector<1x1x1xf32>
    %1010 = vector.extract %1009[0, 0, 0] : f32 from vector<1x1x1xf32>
    %c0_i32_265 = arith.constant 0 : i32
    %1011 = vector.broadcast %c0_i32_265 : i32 to vector<8x128xi32>
    %1012 = arith.cmpi eq, %4, %1011 : vector<8x128xi32>
    %cst_266 = arith.constant 0.000000e+00 : f32
    %1013 = vector.broadcast %977 : f32 to vector<8x128xf32>
    %1014 = vector.broadcast %cst_266 : f32 to vector<8x128xf32>
    %1015 = arith.select %1012, %1013, %1014 : vector<8x128xi1>, vector<8x128xf32>
    %c1_i32_267 = arith.constant 1 : i32
    %1016 = vector.broadcast %c1_i32_267 : i32 to vector<8x128xi32>
    %1017 = arith.cmpi eq, %4, %1016 : vector<8x128xi32>
    %cst_268 = arith.constant 0.000000e+00 : f32
    %1018 = vector.broadcast %841 : f32 to vector<8x128xf32>
    %1019 = vector.broadcast %cst_268 : f32 to vector<8x128xf32>
    %1020 = arith.select %1017, %1018, %1019 : vector<8x128xi1>, vector<8x128xf32>
    %1021 = arith.addf %1015, %1020 : vector<8x128xf32>
    %c2_i32_269 = arith.constant 2 : i32
    %1022 = vector.broadcast %c2_i32_269 : i32 to vector<8x128xi32>
    %1023 = arith.cmpi eq, %4, %1022 : vector<8x128xi32>
    %cst_270 = arith.constant 0.000000e+00 : f32
    %1024 = vector.broadcast %815 : f32 to vector<8x128xf32>
    %1025 = vector.broadcast %cst_270 : f32 to vector<8x128xf32>
    %1026 = arith.select %1023, %1024, %1025 : vector<8x128xi1>, vector<8x128xf32>
    %1027 = arith.addf %1021, %1026 : vector<8x128xf32>
    %c3_i32_271 = arith.constant 3 : i32
    %1028 = vector.broadcast %c3_i32_271 : i32 to vector<8x128xi32>
    %1029 = arith.cmpi eq, %4, %1028 : vector<8x128xi32>
    %cst_272 = arith.constant 0.000000e+00 : f32
    %1030 = vector.broadcast %973 : f32 to vector<8x128xf32>
    %1031 = vector.broadcast %cst_272 : f32 to vector<8x128xf32>
    %1032 = arith.select %1029, %1030, %1031 : vector<8x128xi1>, vector<8x128xf32>
    %1033 = arith.addf %1027, %1032 : vector<8x128xf32>
    %c4_i32_273 = arith.constant 4 : i32
    %1034 = vector.broadcast %c4_i32_273 : i32 to vector<8x128xi32>
    %1035 = arith.cmpi eq, %4, %1034 : vector<8x128xi32>
    %cst_274 = arith.constant 0.000000e+00 : f32
    %1036 = vector.broadcast %997 : f32 to vector<8x128xf32>
    %1037 = vector.broadcast %cst_274 : f32 to vector<8x128xf32>
    %1038 = arith.select %1035, %1036, %1037 : vector<8x128xi1>, vector<8x128xf32>
    %1039 = arith.addf %1033, %1038 : vector<8x128xf32>
    %c5_i32_275 = arith.constant 5 : i32
    %1040 = vector.broadcast %c5_i32_275 : i32 to vector<8x128xi32>
    %1041 = arith.cmpi eq, %4, %1040 : vector<8x128xi32>
    %cst_276 = arith.constant 0.000000e+00 : f32
    %1042 = vector.broadcast %1010 : f32 to vector<8x128xf32>
    %1043 = vector.broadcast %cst_276 : f32 to vector<8x128xf32>
    %1044 = arith.select %1041, %1042, %1043 : vector<8x128xi1>, vector<8x128xf32>
    %1045 = arith.addf %1039, %1044 : vector<8x128xf32>
    %c3_277 = arith.constant 3 : index
    %c0_278 = arith.constant 0 : index
    %c0_279 = arith.constant 0 : index
    %1046 = vector.load %arg4[%c3_277, %c0_278, %c0_279] : memref<4x8x128xf32, #tpu.memory_space<vmem>>, vector<1x8x128xf32>
    %1047 = vector.shape_cast %1046 : vector<1x8x128xf32> to vector<8x128xf32>
    %1048 = vector.shape_cast %1045 : vector<8x128xf32> to vector<1x8x128xf32>
    tpu.vector_store %arg4[%c3_277, %c0_278, %c0_279], %1048 {strides = array<i32>} : memref<4x8x128xf32, #tpu.memory_space<vmem>>, vector<1x8x128xf32>,
    return
  }
  func.func @transform_0(%arg0: i32) -> (i32, i32, i32) {
    %c0_i32 = arith.constant 0 : i32
    %c0_i32_0 = arith.constant 0 : i32
    %c0_i32_1 = arith.constant 0 : i32
    return %arg0, %c0_i32, %c0_i32_0 : i32, i32, i32
  }
  func.func @transform_1(%arg0: i32) -> (i32, i32, i32) {
    %c0_i32 = arith.constant 0 : i32
    %c0_i32_0 = arith.constant 0 : i32
    %c0_i32_1 = arith.constant 0 : i32
    return %arg0, %c0_i32, %c0_i32_0 : i32, i32, i32
  }
  func.func @transform_2(%arg0: i32) -> (i32, i32, i32) {
    %c0_i32 = arith.constant 0 : i32
    %c0_i32_0 = arith.constant 0 : i32
    %c0_i32_1 = arith.constant 0 : i32
    return %arg0, %c0_i32, %c0_i32_0 : i32, i32, i32
  }
  func.func @transform_3(%arg0: i32) -> (i32, i32, i32) {
    %c0_i32 = arith.constant 0 : i32
    %c0_i32_0 = arith.constant 0 : i32
    %c0_i32_1 = arith.constant 0 : i32
    return %arg0, %c0_i32, %c0_i32_0 : i32, i32, i32
  }
}

</mosaic_0001>

<llo_original>
// kernel: tpu_custom_call.1
$region0: #{tpu_custom_call.1}
  #allocation0 [shape = 'u32[]', space=smem, size = 0x4, offset = 0x4, fixed_abs, tag = 'smem constant byte address 0x4 - core index']
  #allocation1 [shape = 'u32[72,128]{1,0:T(1,128)}', space=vmem, size = 0x9000, scoped, tag = 'internal scratch']
  %s0 = inlined_call_operand.vmem [shape: f32[4,8,32], index: 0, kind: input, shape index: {}]
  %s1 = inlined_call_operand.vmem [shape: s32[4,1,8], index: 1, kind: input, shape index: {}]
  %s2 = inlined_call_operand.vmem [shape: s32[4,8,1], index: 2, kind: input, shape index: {}]
  %s3 = inlined_call_operand.hbm [shape: f32[4,8,128], index: 3, kind: output, shape index: {}]
  %s4 = sld [smem:[#allocation0]]
  $region22: #{tpu_custom_call.1} parent=0
    _
  %s6 = ssub.s32 1, %s4
  %s7 = scalar_select 0, %s6, %s4
  $region1: #{tpu_custom_call.1} parent=0
    #allocation2 [shape = 'u8[16384]{0}', space=vmem, size = 0x4000, scoped, tag = 'output window, operand 0, single buffered']
    #allocation3 [shape = 's32[1]{0}', space=sflag, size = 0x4, scoped, tag = 'scoped memory for tpu_custom_call.1']
    %8 = vsyncpa [#allocation3], 0
    // Predicated region
    $region2: #{tpu_custom_call.1} parent=1 // pred_check
      _
    $region3: #{tpu_custom_call.1} parent=1 // pred_check_branch
      %10 = sbr.rel (0) target = $region5
    $region4: #{tpu_custom_call.1} parent=1 // pred_region
      _
    $region5: #{tpu_custom_call.1} parent=1 // pred_fallthru
      _
    // Predicated region
    $region6: #{tpu_custom_call.1} parent=1 // pred_check
      _
    $region7: #{tpu_custom_call.1} parent=1 // pred_check_branch
      %12 = sbr.rel (0) target = $region9
    $region8: #{tpu_custom_call.1} parent=1 // pred_region
      _
    $region9: #{tpu_custom_call.1} parent=1 // pred_fallthru
      _
    // Predicated region
    $region10: #{tpu_custom_call.1} parent=1 // pred_check
      _
    $region11: #{tpu_custom_call.1} parent=1 // pred_check_branch
      %14 = sbr.rel (0) target = $region13
    $region12: #{tpu_custom_call.1} parent=1 // pred_region
      _
    $region13: #{tpu_custom_call.1} parent=1 // pred_fallthru
      _
    %v15 = vlaneseq
    %v16 = vshrl.u32 %v15, 7
    %v17 = vlaneseq
    %v18 = vand.u32 %v17, 127
    %vm19 = vcmp.eq.s32.totalorder %v16, %v18
    %v20 = vld [vmem:[%s0] sm:$0xff]
    %v21 = vld [vmem:[%s1] sm:$0x1]
    %v22 = vld [vmem:[%s2] sm:$0xff]
    %vm23 = vcmask 261120
    %v25 = vsel %vm23, %v20, 0
    %27 = vmatpush.xpose.msra.mxu0 0.0
    %28 = vmatpush.xpose.msra.mxu0 0.0
    %29 = vmatpush.xpose.msra.mxu0 0.0
    %30 = vmatpush.xpose.msra.mxu0 0.0
    %31 = vmatpush.xpose.msra.mxu0 0.0
    %32 = vmatpush.xpose.msra.mxu0 0.0
    %33 = vmatpush.xpose.msra.mxu0 0.0
    %34 = vmatpush.xpose.msra.mxu0 0.0
    %35 = vmatpush.xpose.msra.mxu0 0.0
    %36 = vmatpush.xpose.msra.mxu0 0.0
    %37 = vmatpush.xpose.msra.mxu0 0.0
    %38 = vmatpush.xpose.msra.mxu0 0.0
    %39 = vmatpush.xpose.msra.mxu0 0.0
    %40 = vmatpush.xpose.msra.mxu0 0.0
    %41 = vmatpush.xpose.msra.mxu0 0.0
    %42 = vmatpush.xpose.msra.mxu0 %v25
    %43 = vmatmul.f32.gmra.mxu0 %v25
    %v44 = vpop.f32.mrf.mxu0
    %v45 = vadd.f32 0.0, %v44
    %46 = vdwg.mxu0
    %v47 = vmul.f32 %v20, %v20
    %v48 = vsel %vm23, %v47, 0.0
    %49 = vadd.xlane.f32.xlu0 %v48
    %v50 = vpop.xlane.xlu0 %49
    %v51 = vsel %vm19, %v45, 0.0
    %vm52 = vcmask 64512
    %v53 = vsel %vm52, %v51, 0.0
    %v54 = vrot.slane %v53, 4
    %v55 = vadd.f32 %v53, %v54
    %v56 = vrot.slane %v55, 2
    %v57 = vadd.f32 %v55, %v56
    %v58 = vrot.slane %v57, 1
    %v59 = vadd.f32 %v57, %v58
    %v60 = vadd.f32 %v50, %v59
    %v61 = vmul.f32 %v45, 2.0
    %v62 = vsub.f32 %v60, %v61
    %v63 = vmax.f32 %v62, 0.0
    %v64 = vrsqrt.pop %v63
    %v65 = vmul.f32 %v64, %v63
    %v66 = vmul.f32 %v65, %v64
    %v67 = vmul.f32 0.5, %v66
    %v68 = vsub.f32 1.5, %v67
    %v69 = vmul.f32 %v64, %v68
    %v70 = vmul.f32 %v63, %v69
    %vm71 = vcmp.eq.f32.partialorder %v63, inf
    %v72 = vsel %vm71, %v63, %v70
    %vm73 = vcmp.eq.f32.partialorder %v63, 0.0
    %v74 = vand.u32 %v63, 2147483648
    %v75 = vsel %vm73, %v74, %v72
    %v76 = vsel %vm52, %v75, 0.0
    %77 = vadd.xlane.f32.xlu0 %v76
    %v78 = vpop.xlane.xlu0 %77
    %v79 = vrot.slane %v78, 4
    %v80 = vadd.f32 %v78, %v79
    %v81 = vrot.slane %v80, 2
    %v82 = vadd.f32 %v80, %v81
    %v83 = vrot.slane %v82, 1
    %v84 = vadd.f32 %v82, %v83
    %s85 = vtos %v84
    %v86 = vrcp.pop 64.0
    %v87 = vmul.f32 64.0, %v86
    %v88 = vsub.f32 1.0, %v87
    %v89 = vmul.f32 %v86, %v88
    %v90 = vadd.f32 %v86, %v89
    %vm91 = vweird.f32 %v86
    %v92 = vsel %vm91, %v86, %v90
    %s93 = vtos %v92
    %s94 = smul.f32 %s85, %s93
    %95 = vset.pattern.permute.xlu0 0
    %96 = vperm.xlu0 %95, %v22
    %v97 = vpop.permute.xlu0 %96
    %v98 = vperm.slane %v21, 0
    %vm99 = vcmp.eq.s32.totalorder %v97, %v98
    %vm100 = vmxor %vm99, 1
    %v101 = vsel %vm99, 1, 0
    %v102 = vcvt.s32.f32 %v101
    %v103 = vsel %vm100, 1, 0
    %v104 = vcvt.s32.f32 %v103
    %v105 = vsel %vm99, %v75, -inf
    %v106 = vsel %vm52, %v105, -inf
    %107 = vmax.xlane.f32.xlu0 %v106
    %v108 = vpop.xlane.xlu0 %107
    %v109 = vsel %vm100, %v75, inf
    %v110 = vsel %vm52, %v109, inf
    %111 = vmin.xlane.f32.xlu0 %v110
    %v112 = vpop.xlane.xlu0 %111
    %v113 = vadd.f32 %v108, 0.2
    %v114 = vsub.f32 %v113, %v112
    %v115 = vmax.f32 %v114, 0.0
    %vm116 = vcmask 7168
    %v117 = vsel %vm116, %v115, 0.0
    %118 = vadd.xlane.f32.xlu0 %v117
    %v119 = vpop.xlane.xlu0 %118
    %v120 = vrot.slane %v119, 4
    %v121 = vadd.f32 %v119, %v120
    %v122 = vrot.slane %v121, 2
    %v123 = vadd.f32 %v121, %v122
    %v124 = vrot.slane %v123, 1
    %v125 = vadd.f32 %v123, %v124
    %s126 = vtos %v125
    %v127 = vrcp.pop 8.0
    %v128 = vmul.f32 8.0, %v127
    %v129 = vsub.f32 1.0, %v128
    %v130 = vmul.f32 %v127, %v129
    %v131 = vadd.f32 %v127, %v130
    %vm132 = vweird.f32 %v127
    %v133 = vsel %vm132, %v127, %v131
    %s134 = vtos %v133
    %s135 = smul.f32 %s126, %s134
    %v136 = vadd.f32 %v75, 0.2
    %v137 = vperm.slane %v75, 0
    %v138 = vsub.f32 %v136, %v137
    %v139 = vmax.f32 %v138, 0.0
    %v140 = vmul.f32 %v102, %v139
    %v141 = vperm.slane %v104, 0
    %v142 = vmul.f32 %v140, %v141
    %v143 = vadd.f32 %v142, 0.0
    %vm144 = vcmp.gt.f32.partialorder %v142, 0.0
    %v145 = vsel %vm144, 1, 0
    %v146 = vcvt.s32.f32 %v145
    %v147 = vadd.f32 %v146, 0.0
    %v148 = vperm.slane %v75, 1
    %v149 = vsub.f32 %v136, %v148
    %v150 = vmax.f32 %v149, 0.0
    %v151 = vmul.f32 %v102, %v150
    %v152 = vperm.slane %v104, 1
    %v153 = vmul.f32 %v151, %v152
    %v154 = vadd.f32 %v143, %v153
    %vm155 = vcmp.gt.f32.partialorder %v153, 0.0
    %v156 = vsel %vm155, 1, 0
    %v157 = vcvt.s32.f32 %v156
    %v158 = vadd.f32 %v147, %v157
    %v159 = vperm.slane %v75, 2
    %v160 = vsub.f32 %v136, %v159
    %v161 = vmax.f32 %v160, 0.0
    %v162 = vmul.f32 %v102, %v161
    %v163 = vperm.slane %v104, 2
    %v164 = vmul.f32 %v162, %v163
    %v165 = vadd.f32 %v154, %v164
    %vm166 = vcmp.gt.f32.partialorder %v164, 0.0
    %v167 = vsel %vm166, 1, 0
    %v168 = vcvt.s32.f32 %v167
    %v169 = vadd.f32 %v158, %v168
    %v170 = vperm.slane %v75, 3
    %v171 = vsub.f32 %v136, %v170
    %v172 = vmax.f32 %v171, 0.0
    %v173 = vmul.f32 %v102, %v172
    %v174 = vperm.slane %v104, 3
    %v175 = vmul.f32 %v173, %v174
    %v176 = vadd.f32 %v165, %v175
    %vm177 = vcmp.gt.f32.partialorder %v175, 0.0
    %v178 = vsel %vm177, 1, 0
    %v179 = vcvt.s32.f32 %v178
    %v180 = vadd.f32 %v169, %v179
    %v181 = vperm.slane %v75, 4
    %v182 = vsub.f32 %v136, %v181
    %v183 = vmax.f32 %v182, 0.0
    %v184 = vmul.f32 %v102, %v183
    %v185 = vperm.slane %v104, 4
    %v186 = vmul.f32 %v184, %v185
    %v187 = vadd.f32 %v176, %v186
    %vm188 = vcmp.gt.f32.partialorder %v186, 0.0
    %v189 = vsel %vm188, 1, 0
    %v190 = vcvt.s32.f32 %v189
    %v191 = vadd.f32 %v180, %v190
    %v192 = vperm.slane %v75, 5
    %v193 = vsub.f32 %v136, %v192
    %v194 = vmax.f32 %v193, 0.0
    %v195 = vmul.f32 %v102, %v194
    %v196 = vperm.slane %v104, 5
    %v197 = vmul.f32 %v195, %v196
    %v198 = vadd.f32 %v187, %v197
    %vm199 = vcmp.gt.f32.partialorder %v197, 0.0
    %v200 = vsel %vm199, 1, 0
    %v201 = vcvt.s32.f32 %v200
    %v202 = vadd.f32 %v191, %v201
    %v203 = vperm.slane %v75, 6
    %v204 = vsub.f32 %v136, %v203
    %v205 = vmax.f32 %v204, 0.0
    %v206 = vmul.f32 %v102, %v205
    %v207 = vperm.slane %v104, 6
    %v208 = vmul.f32 %v206, %v207
    %v209 = vadd.f32 %v198, %v208
    %vm210 = vcmp.gt.f32.partialorder %v208, 0.0
    %v211 = vsel %vm210, 1, 0
    %v212 = vcvt.s32.f32 %v211
    %v213 = vadd.f32 %v202, %v212
    %v214 = vperm.slane %v75, 7
    %v215 = vsub.f32 %v136, %v214
    %v216 = vmax.f32 %v215, 0.0
    %v217 = vmul.f32 %v102, %v216
    %v218 = vperm.slane %v104, 7
    %v219 = vmul.f32 %v217, %v218
    %v220 = vadd.f32 %v209, %v219
    %vm221 = vcmp.gt.f32.partialorder %v219, 0.0
    %v222 = vsel %vm221, 1, 0
    %v223 = vcvt.s32.f32 %v222
    %v224 = vadd.f32 %v213, %v223
    %v225 = vsel %vm52, %v220, 0.0
    %226 = vadd.xlane.f32.xlu0 %v225
    %v227 = vpop.xlane.xlu0 %226
    %v228 = vrot.slane %v227, 4
    %v229 = vadd.f32 %v227, %v228
    %v230 = vrot.slane %v229, 2
    %v231 = vadd.f32 %v229, %v230
    %v232 = vrot.slane %v231, 1
    %v233 = vadd.f32 %v231, %v232
    %s234 = vtos %v233
    %v235 = vsel %vm52, %v224, 0.0
    %236 = vadd.xlane.f32.xlu0 %v235
    %v237 = vpop.xlane.xlu0 %236
    %v238 = vrot.slane %v237, 4
    %v239 = vadd.f32 %v237, %v238
    %v240 = vrot.slane %v239, 2
    %v241 = vadd.f32 %v239, %v240
    %v242 = vrot.slane %v241, 1
    %v243 = vadd.f32 %v241, %v242
    %s244 = vtos %v243
    %p245 = scmp.gt.f32.partialorder %s244, 0.0
    %s246 = smax.f32 %s244, 1.0
    %v247 = vstv %s246
    %v248 = vrcp.pop %v247
    %v249 = vmul.f32 %v247, %v248
    %v250 = vsub.f32 1.0, %v249
    %v251 = vmul.f32 %v248, %v250
    %v252 = vadd.f32 %v248, %v251
    %vm253 = vweird.f32 %v247
    %vm254 = vweird.f32 %v248
    %vm255 = vmor %vm253, %vm254
    %v256 = vsel %vm255, %v248, %v252
    %v257 = vand.u32 2147483647, %v247
    %vm258 = vcmp.eq.f32.partialorder %v257, 8.507059e+37
    %v259 = vand.u32 %v247, 2147483648
    %v260 = vor.u32 1.1754944e-38, %v259
    %v261 = vsel %vm258, %v260, %v256
    %s262 = vtos %v261
    %s263 = smul.f32 %s234, %s262
    %s264 = scalar_select %p245, %s263, 0.0
    %v265 = vsel %vm23, %v20, -inf
    %266 = vmax.xlane.f32.xlu0 %v265
    %v267 = vpop.xlane.xlu0 %266
    %v268 = vsub.f32 %v20, %v267
    %v269 = vmul.f32 %v268, 1.442695
    %v270 = vpow.pop %v269
    %v271 = vsel %vm23, %v270, 0.0
    %272 = vadd.xlane.f32.xlu0 %v271
    %v273 = vpop.xlane.xlu0 %272
    %v274 = vlog2.pop %v273
    %v275 = vmul.f32 %v274, 0.6931472
    %v276 = vadd.f32 %v267, %v275
    %vm277 = vcmp.eq.s32.totalorder %v18, %v97
    %v278 = vsel %vm277, %v20, 0.0
    %v279 = vsel %vm23, %v278, 0.0
    %280 = vadd.xlane.f32.xlu0 %v279
    %v281 = vpop.xlane.xlu0 %280
    %v282 = vsub.f32 %v276, %v281
    %v283 = vsel %vm116, %v282, 0.0
    %284 = vadd.xlane.f32.xlu0 %v283
    %v285 = vpop.xlane.xlu0 %284
    %v286 = vrot.slane %v285, 4
    %v287 = vadd.f32 %v285, %v286
    %v288 = vrot.slane %v287, 2
    %v289 = vadd.f32 %v287, %v288
    %v290 = vrot.slane %v289, 1
    %v291 = vadd.f32 %v289, %v290
    %s292 = vtos %v291
    %vm293 = vcmp.eq.f32.partialorder %v20, %v267
    %v294 = vsel %vm293, %v18, 32
    %v295 = vsel %vm23, %v294, 2147483647
    %v296 = vand.u32 %v295, 65535
    %v297 = vshra.s32 %v295, 16
    %v298 = vcvt.s32.f32 %v296
    %v299 = vcvt.s32.f32 %v297
    %300 = vmin.xlane.f32.xlu0 %v299
    %v301 = vpop.xlane.xlu0 %300
    %vm302 = vcmp.eq.f32.partialorder %v299, %v301
    %v303 = vsel %vm302, %v298, inf
    %304 = vmin.xlane.f32.xlu0 %v303
    %v305 = vpop.xlane.xlu0 %304
    %v306 = vcvt.f32.s32 %v305
    %v307 = vcvt.f32.s32 %v301
    %v308 = vshll.u32 %v307, 16
    %v309 = vadd.s32 %v308, %v306
    %vm310 = vcmp.eq.s32.totalorder %v309, %v22
    %v311 = vsel %vm310, 1, 0
    %v312 = vcvt.s32.f32 %v311
    %v313 = vsel %vm116, %v312, 0.0
    %314 = vadd.xlane.f32.xlu0 %v313
    %v315 = vpop.xlane.xlu0 %314
    %v316 = vrot.slane %v315, 4
    %v317 = vadd.f32 %v315, %v316
    %v318 = vrot.slane %v317, 2
    %v319 = vadd.f32 %v317, %v318
    %v320 = vrot.slane %v319, 1
    %v321 = vadd.f32 %v319, %v320
    %s322 = vtos %v321
    %vm323 = vcmp.eq.s32.totalorder %v16, 0
    %v324 = vstv %s264
    %v325 = vsel %vm323, %v324, 0.0
    %vm326 = vcmp.eq.s32.totalorder %v16, 1
    %v327 = vstv %s135
    %v328 = vsel %vm326, %v327, 0.0
    %v329 = vadd.f32 %v325, %v328
    %vm330 = vcmp.eq.s32.totalorder %v16, 2
    %v331 = vstv %s94
    %v332 = vsel %vm330, %v331, 0.0
    %v333 = vadd.f32 %v329, %v332
    %vm334 = vcmp.eq.s32.totalorder %v16, 3
    %v335 = vstv %s244
    %v336 = vsel %vm334, %v335, 0.0
    %v337 = vadd.f32 %v333, %v336
    %vm338 = vcmp.eq.s32.totalorder %v16, 4
    %v339 = vstv %s292
    %v340 = vsel %vm338, %v339, 0.0
    %v341 = vadd.f32 %v337, %v340
    %vm342 = vcmp.eq.s32.totalorder %v16, 5
    %v343 = vstv %s322
    %v344 = vsel %vm342, %v343, 0.0
    %v345 = vadd.f32 %v341, %v344
    %346 = vst [vmem:[#allocation2] sm:$0xff] %v345
    %s347 = scalar_lea.vmem %s0, 8
    %v348 = vld [vmem:[%s347] sm:$0xff]
    %s349 = scalar_lea.vmem %s1, 1
    %v350 = vld [vmem:[%s349] sm:$0x1]
    %s351 = scalar_lea.vmem %s2, 8
    %v352 = vld [vmem:[%s351] sm:$0xff]
    %v354 = vsel %vm23, %v348, 0
    %356 = vmatpush.xpose.msra.mxu0 0.0
    %357 = vmatpush.xpose.msra.mxu0 0.0
    %358 = vmatpush.xpose.msra.mxu0 0.0
    %359 = vmatpush.xpose.msra.mxu0 0.0
    %360 = vmatpush.xpose.msra.mxu0 0.0
    %361 = vmatpush.xpose.msra.mxu0 0.0
    %362 = vmatpush.xpose.msra.mxu0 0.0
    %363 = vmatpush.xpose.msra.mxu0 0.0
    %364 = vmatpush.xpose.msra.mxu0 0.0
    %365 = vmatpush.xpose.msra.mxu0 0.0
    %366 = vmatpush.xpose.msra.mxu0 0.0
    %367 = vmatpush.xpose.msra.mxu0 0.0
    %368 = vmatpush.xpose.msra.mxu0 0.0
    %369 = vmatpush.xpose.msra.mxu0 0.0
    %370 = vmatpush.xpose.msra.mxu0 0.0
    %371 = vmatpush.xpose.msra.mxu0 %v354
    %372 = vmatmul.f32.gmra.mxu0 %v354
    %v373 = vpop.f32.mrf.mxu0
    %v374 = vadd.f32 0.0, %v373
    %375 = vdwg.mxu0
    %v376 = vmul.f32 %v348, %v348
    %v377 = vsel %vm23, %v376, 0.0
    %378 = vadd.xlane.f32.xlu0 %v377
    %v379 = vpop.xlane.xlu0 %378
    %v380 = vsel %vm19, %v374, 0.0
    %v381 = vsel %vm52, %v380, 0.0
    %v382 = vrot.slane %v381, 4
    %v383 = vadd.f32 %v381, %v382
    %v384 = vrot.slane %v383, 2
    %v385 = vadd.f32 %v383, %v384
    %v386 = vrot.slane %v385, 1
    %v387 = vadd.f32 %v385, %v386
    %v388 = vadd.f32 %v379, %v387
    %v389 = vmul.f32 %v374, 2.0
    %v390 = vsub.f32 %v388, %v389
    %v391 = vmax.f32 %v390, 0.0
    %v392 = vrsqrt.pop %v391
    %v393 = vmul.f32 %v392, %v391
    %v394 = vmul.f32 %v393, %v392
    %v395 = vmul.f32 0.5, %v394
    %v396 = vsub.f32 1.5, %v395
    %v397 = vmul.f32 %v392, %v396
    %v398 = vmul.f32 %v391, %v397
    %vm399 = vcmp.eq.f32.partialorder %v391, inf
    %v400 = vsel %vm399, %v391, %v398
    %vm401 = vcmp.eq.f32.partialorder %v391, 0.0
    %v402 = vand.u32 %v391, 2147483648
    %v403 = vsel %vm401, %v402, %v400
    %v404 = vsel %vm52, %v403, 0.0
    %405 = vadd.xlane.f32.xlu0 %v404
    %v406 = vpop.xlane.xlu0 %405
    %v407 = vrot.slane %v406, 4
    %v408 = vadd.f32 %v406, %v407
    %v409 = vrot.slane %v408, 2
    %v410 = vadd.f32 %v408, %v409
    %v411 = vrot.slane %v410, 1
    %v412 = vadd.f32 %v410, %v411
    %s413 = vtos %v412
    %v414 = vrcp.pop 64.0
    %v415 = vmul.f32 64.0, %v414
    %v416 = vsub.f32 1.0, %v415
    %v417 = vmul.f32 %v414, %v416
    %v418 = vadd.f32 %v414, %v417
    %vm419 = vweird.f32 %v414
    %v420 = vsel %vm419, %v414, %v418
    %s421 = vtos %v420
    %s422 = smul.f32 %s413, %s421
    %423 = vset.pattern.permute.xlu0 0
    %424 = vperm.xlu0 %423, %v352
    %v425 = vpop.permute.xlu0 %424
    %v426 = vperm.slane %v350, 0
    %vm427 = vcmp.eq.s32.totalorder %v425, %v426
    %vm428 = vmxor %vm427, 1
    %v429 = vsel %vm427, 1, 0
    %v430 = vcvt.s32.f32 %v429
    %v431 = vsel %vm428, 1, 0
    %v432 = vcvt.s32.f32 %v431
    %v433 = vsel %vm427, %v403, -inf
    %v434 = vsel %vm52, %v433, -inf
    %435 = vmax.xlane.f32.xlu0 %v434
    %v436 = vpop.xlane.xlu0 %435
    %v437 = vsel %vm428, %v403, inf
    %v438 = vsel %vm52, %v437, inf
    %439 = vmin.xlane.f32.xlu0 %v438
    %v440 = vpop.xlane.xlu0 %439
    %v441 = vadd.f32 %v436, 0.2
    %v442 = vsub.f32 %v441, %v440
    %v443 = vmax.f32 %v442, 0.0
    %v444 = vsel %vm116, %v443, 0.0
    %445 = vadd.xlane.f32.xlu0 %v444
    %v446 = vpop.xlane.xlu0 %445
    %v447 = vrot.slane %v446, 4
    %v448 = vadd.f32 %v446, %v447
    %v449 = vrot.slane %v448, 2
    %v450 = vadd.f32 %v448, %v449
    %v451 = vrot.slane %v450, 1
    %v452 = vadd.f32 %v450, %v451
    %s453 = vtos %v452
    %v454 = vrcp.pop 8.0
    %v455 = vmul.f32 8.0, %v454
    %v456 = vsub.f32 1.0, %v455
    %v457 = vmul.f32 %v454, %v456
    %v458 = vadd.f32 %v454, %v457
    %vm459 = vweird.f32 %v454
    %v460 = vsel %vm459, %v454, %v458
    %s461 = vtos %v460
    %s462 = smul.f32 %s453, %s461
    %v463 = vadd.f32 %v403, 0.2
    %v464 = vperm.slane %v403, 0
    %v465 = vsub.f32 %v463, %v464
    %v466 = vmax.f32 %v465, 0.0
    %v467 = vmul.f32 %v430, %v466
    %v468 = vperm.slane %v432, 0
    %v469 = vmul.f32 %v467, %v468
    %v470 = vadd.f32 %v469, 0.0
    %vm471 = vcmp.gt.f32.partialorder %v469, 0.0
    %v472 = vsel %vm471, 1, 0
    %v473 = vcvt.s32.f32 %v472
    %v474 = vadd.f32 %v473, 0.0
    %v475 = vperm.slane %v403, 1
    %v476 = vsub.f32 %v463, %v475
    %v477 = vmax.f32 %v476, 0.0
    %v478 = vmul.f32 %v430, %v477
    %v479 = vperm.slane %v432, 1
    %v480 = vmul.f32 %v478, %v479
    %v481 = vadd.f32 %v470, %v480
    %vm482 = vcmp.gt.f32.partialorder %v480, 0.0
    %v483 = vsel %vm482, 1, 0
    %v484 = vcvt.s32.f32 %v483
    %v485 = vadd.f32 %v474, %v484
    %v486 = vperm.slane %v403, 2
    %v487 = vsub.f32 %v463, %v486
    %v488 = vmax.f32 %v487, 0.0
    %v489 = vmul.f32 %v430, %v488
    %v490 = vperm.slane %v432, 2
    %v491 = vmul.f32 %v489, %v490
    %v492 = vadd.f32 %v481, %v491
    %vm493 = vcmp.gt.f32.partialorder %v491, 0.0
    %v494 = vsel %vm493, 1, 0
    %v495 = vcvt.s32.f32 %v494
    %v496 = vadd.f32 %v485, %v495
    %v497 = vperm.slane %v403, 3
    %v498 = vsub.f32 %v463, %v497
    %v499 = vmax.f32 %v498, 0.0
    %v500 = vmul.f32 %v430, %v499
    %v501 = vperm.slane %v432, 3
    %v502 = vmul.f32 %v500, %v501
    %v503 = vadd.f32 %v492, %v502
    %vm504 = vcmp.gt.f32.partialorder %v502, 0.0
    %v505 = vsel %vm504, 1, 0
    %v506 = vcvt.s32.f32 %v505
    %v507 = vadd.f32 %v496, %v506
    %v508 = vperm.slane %v403, 4
    %v509 = vsub.f32 %v463, %v508
    %v510 = vmax.f32 %v509, 0.0
    %v511 = vmul.f32 %v430, %v510
    %v512 = vperm.slane %v432, 4
    %v513 = vmul.f32 %v511, %v512
    %v514 = vadd.f32 %v503, %v513
    %vm515 = vcmp.gt.f32.partialorder %v513, 0.0
    %v516 = vsel %vm515, 1, 0
    %v517 = vcvt.s32.f32 %v516
    %v518 = vadd.f32 %v507, %v517
    %v519 = vperm.slane %v403, 5
    %v520 = vsub.f32 %v463, %v519
    %v521 = vmax.f32 %v520, 0.0
    %v522 = vmul.f32 %v430, %v521
    %v523 = vperm.slane %v432, 5
    %v524 = vmul.f32 %v522, %v523
    %v525 = vadd.f32 %v514, %v524
    %vm526 = vcmp.gt.f32.partialorder %v524, 0.0
    %v527 = vsel %vm526, 1, 0
    %v528 = vcvt.s32.f32 %v527
    %v529 = vadd.f32 %v518, %v528
    %v530 = vperm.slane %v403, 6
    %v531 = vsub.f32 %v463, %v530
    %v532 = vmax.f32 %v531, 0.0
    %v533 = vmul.f32 %v430, %v532
    %v534 = vperm.slane %v432, 6
    %v535 = vmul.f32 %v533, %v534
    %v536 = vadd.f32 %v525, %v535
    %vm537 = vcmp.gt.f32.partialorder %v535, 0.0
    %v538 = vsel %vm537, 1, 0
    %v539 = vcvt.s32.f32 %v538
    %v540 = vadd.f32 %v529, %v539
    %v541 = vperm.slane %v403, 7
    %v542 = vsub.f32 %v463, %v541
    %v543 = vmax.f32 %v542, 0.0
    %v544 = vmul.f32 %v430, %v543
    %v545 = vperm.slane %v432, 7
    %v546 = vmul.f32 %v544, %v545
    %v547 = vadd.f32 %v536, %v546
    %vm548 = vcmp.gt.f32.partialorder %v546, 0.0
    %v549 = vsel %vm548, 1, 0
    %v550 = vcvt.s32.f32 %v549
    %v551 = vadd.f32 %v540, %v550
    %v552 = vsel %vm52, %v547, 0.0
    %553 = vadd.xlane.f32.xlu0 %v552
    %v554 = vpop.xlane.xlu0 %553
    %v555 = vrot.slane %v554, 4
    %v556 = vadd.f32 %v554, %v555
    %v557 = vrot.slane %v556, 2
    %v558 = vadd.f32 %v556, %v557
    %v559 = vrot.slane %v558, 1
    %v560 = vadd.f32 %v558, %v559
    %s561 = vtos %v560
    %v562 = vsel %vm52, %v551, 0.0
    %563 = vadd.xlane.f32.xlu0 %v562
    %v564 = vpop.xlane.xlu0 %563
    %v565 = vrot.slane %v564, 4
    %v566 = vadd.f32 %v564, %v565
    %v567 = vrot.slane %v566, 2
    %v568 = vadd.f32 %v566, %v567
    %v569 = vrot.slane %v568, 1
    %v570 = vadd.f32 %v568, %v569
    %s571 = vtos %v570
    %p572 = scmp.gt.f32.partialorder %s571, 0.0
    %s573 = smax.f32 %s571, 1.0
    %v574 = vstv %s573
    %v575 = vrcp.pop %v574
    %v576 = vmul.f32 %v574, %v575
    %v577 = vsub.f32 1.0, %v576
    %v578 = vmul.f32 %v575, %v577
    %v579 = vadd.f32 %v575, %v578
    %vm580 = vweird.f32 %v574
    %vm581 = vweird.f32 %v575
    %vm582 = vmor %vm580, %vm581
    %v583 = vsel %vm582, %v575, %v579
    %v584 = vand.u32 2147483647, %v574
    %vm585 = vcmp.eq.f32.partialorder %v584, 8.507059e+37
    %v586 = vand.u32 %v574, 2147483648
    %v587 = vor.u32 1.1754944e-38, %v586
    %v588 = vsel %vm585, %v587, %v583
    %s589 = vtos %v588
    %s590 = smul.f32 %s561, %s589
    %s591 = scalar_select %p572, %s590, 0.0
    %v592 = vsel %vm23, %v348, -inf
    %593 = vmax.xlane.f32.xlu0 %v592
    %v594 = vpop.xlane.xlu0 %593
    %v595 = vsub.f32 %v348, %v594
    %v596 = vmul.f32 %v595, 1.442695
    %v597 = vpow.pop %v596
    %v598 = vsel %vm23, %v597, 0.0
    %599 = vadd.xlane.f32.xlu0 %v598
    %v600 = vpop.xlane.xlu0 %599
    %v601 = vlog2.pop %v600
    %v602 = vmul.f32 %v601, 0.6931472
    %v603 = vadd.f32 %v594, %v602
    %vm604 = vcmp.eq.s32.totalorder %v18, %v425
    %v605 = vsel %vm604, %v348, 0.0
    %v606 = vsel %vm23, %v605, 0.0
    %607 = vadd.xlane.f32.xlu0 %v606
    %v608 = vpop.xlane.xlu0 %607
    %v609 = vsub.f32 %v603, %v608
    %v610 = vsel %vm116, %v609, 0.0
    %611 = vadd.xlane.f32.xlu0 %v610
    %v612 = vpop.xlane.xlu0 %611
    %v613 = vrot.slane %v612, 4
    %v614 = vadd.f32 %v612, %v613
    %v615 = vrot.slane %v614, 2
    %v616 = vadd.f32 %v614, %v615
    %v617 = vrot.slane %v616, 1
    %v618 = vadd.f32 %v616, %v617
    %s619 = vtos %v618
    %vm620 = vcmp.eq.f32.partialorder %v348, %v594
    %v621 = vsel %vm620, %v18, 32
    %v622 = vsel %vm23, %v621, 2147483647
    %v623 = vand.u32 %v622, 65535
    %v624 = vshra.s32 %v622, 16
    %v625 = vcvt.s32.f32 %v623
    %v626 = vcvt.s32.f32 %v624
    %627 = vmin.xlane.f32.xlu0 %v626
    %v628 = vpop.xlane.xlu0 %627
    %vm629 = vcmp.eq.f32.partialorder %v626, %v628
    %v630 = vsel %vm629, %v625, inf
    %631 = vmin.xlane.f32.xlu0 %v630
    %v632 = vpop.xlane.xlu0 %631
    %v633 = vcvt.f32.s32 %v632
    %v634 = vcvt.f32.s32 %v628
    %v635 = vshll.u32 %v634, 16
    %v636 = vadd.s32 %v635, %v633
    %vm637 = vcmp.eq.s32.totalorder %v636, %v352
    %v638 = vsel %vm637, 1, 0
    %v639 = vcvt.s32.f32 %v638
    %v640 = vsel %vm116, %v639, 0.0
    %641 = vadd.xlane.f32.xlu0 %v640
    %v642 = vpop.xlane.xlu0 %641
    %v643 = vrot.slane %v642, 4
    %v644 = vadd.f32 %v642, %v643
    %v645 = vrot.slane %v644, 2
    %v646 = vadd.f32 %v644, %v645
    %v647 = vrot.slane %v646, 1
    %v648 = vadd.f32 %v646, %v647
    %s649 = vtos %v648
    %v650 = vstv %s591
    %v651 = vsel %vm323, %v650, 0.0
    %v652 = vstv %s462
    %v653 = vsel %vm326, %v652, 0.0
    %v654 = vadd.f32 %v651, %v653
    %v655 = vstv %s422
    %v656 = vsel %vm330, %v655, 0.0
    %v657 = vadd.f32 %v654, %v656
    %v658 = vstv %s571
    %v659 = vsel %vm334, %v658, 0.0
    %v660 = vadd.f32 %v657, %v659
    %v661 = vstv %s619
    %v662 = vsel %vm338, %v661, 0.0
    %v663 = vadd.f32 %v660, %v662
    %v664 = vstv %s649
    %v665 = vsel %vm342, %v664, 0.0
    %v666 = vadd.f32 %v663, %v665
    %s667 = scalar_lea.vmem [#allocation2], 8
    %668 = vst [vmem:[%s667] sm:$0xff] %v666
    %s669 = scalar_lea.vmem %s0, 16
    %v670 = vld [vmem:[%s669] sm:$0xff]
    %s671 = scalar_lea.vmem %s1, 2
    %v672 = vld [vmem:[%s671] sm:$0x1]
    %s673 = scalar_lea.vmem %s2, 16
    %v674 = vld [vmem:[%s673] sm:$0xff]
    %v676 = vsel %vm23, %v670, 0
    %678 = vmatpush.xpose.msra.mxu0 0.0
    %679 = vmatpush.xpose.msra.mxu0 0.0
    %680 = vmatpush.xpose.msra.mxu0 0.0
    %681 = vmatpush.xpose.msra.mxu0 0.0
    %682 = vmatpush.xpose.msra.mxu0 0.0
    %683 = vmatpush.xpose.msra.mxu0 0.0
    %684 = vmatpush.xpose.msra.mxu0 0.0
    %685 = vmatpush.xpose.msra.mxu0 0.0
    %686 = vmatpush.xpose.msra.mxu0 0.0
    %687 = vmatpush.xpose.msra.mxu0 0.0
    %688 = vmatpush.xpose.msra.mxu0 0.0
    %689 = vmatpush.xpose.msra.mxu0 0.0
    %690 = vmatpush.xpose.msra.mxu0 0.0
    %691 = vmatpush.xpose.msra.mxu0 0.0
    %692 = vmatpush.xpose.msra.mxu0 0.0
    %693 = vmatpush.xpose.msra.mxu0 %v676
    %694 = vmatmul.f32.gmra.mxu0 %v676
    %v695 = vpop.f32.mrf.mxu0
    %v696 = vadd.f32 0.0, %v695
    %697 = vdwg.mxu0
    %v698 = vmul.f32 %v670, %v670
    %v699 = vsel %vm23, %v698, 0.0
    %700 = vadd.xlane.f32.xlu0 %v699
    %v701 = vpop.xlane.xlu0 %700
    %v702 = vsel %vm19, %v696, 0.0
    %v703 = vsel %vm52, %v702, 0.0
    %v704 = vrot.slane %v703, 4
    %v705 = vadd.f32 %v703, %v704
    %v706 = vrot.slane %v705, 2
    %v707 = vadd.f32 %v705, %v706
    %v708 = vrot.slane %v707, 1
    %v709 = vadd.f32 %v707, %v708
    %v710 = vadd.f32 %v701, %v709
    %v711 = vmul.f32 %v696, 2.0
    %v712 = vsub.f32 %v710, %v711
    %v713 = vmax.f32 %v712, 0.0
    %v714 = vrsqrt.pop %v713
    %v715 = vmul.f32 %v714, %v713
    %v716 = vmul.f32 %v715, %v714
    %v717 = vmul.f32 0.5, %v716
    %v718 = vsub.f32 1.5, %v717
    %v719 = vmul.f32 %v714, %v718
    %v720 = vmul.f32 %v713, %v719
    %vm721 = vcmp.eq.f32.partialorder %v713, inf
    %v722 = vsel %vm721, %v713, %v720
    %vm723 = vcmp.eq.f32.partialorder %v713, 0.0
    %v724 = vand.u32 %v713, 2147483648
    %v725 = vsel %vm723, %v724, %v722
    %v726 = vsel %vm52, %v725, 0.0
    %727 = vadd.xlane.f32.xlu0 %v726
    %v728 = vpop.xlane.xlu0 %727
    %v729 = vrot.slane %v728, 4
    %v730 = vadd.f32 %v728, %v729
    %v731 = vrot.slane %v730, 2
    %v732 = vadd.f32 %v730, %v731
    %v733 = vrot.slane %v732, 1
    %v734 = vadd.f32 %v732, %v733
    %s735 = vtos %v734
    %v736 = vrcp.pop 64.0
    %v737 = vmul.f32 64.0, %v736
    %v738 = vsub.f32 1.0, %v737
    %v739 = vmul.f32 %v736, %v738
    %v740 = vadd.f32 %v736, %v739
    %vm741 = vweird.f32 %v736
    %v742 = vsel %vm741, %v736, %v740
    %s743 = vtos %v742
    %s744 = smul.f32 %s735, %s743
    %745 = vset.pattern.permute.xlu0 0
    %746 = vperm.xlu0 %745, %v674
    %v747 = vpop.permute.xlu0 %746
    %v748 = vperm.slane %v672, 0
    %vm749 = vcmp.eq.s32.totalorder %v747, %v748
    %vm750 = vmxor %vm749, 1
    %v751 = vsel %vm749, 1, 0
    %v752 = vcvt.s32.f32 %v751
    %v753 = vsel %vm750, 1, 0
    %v754 = vcvt.s32.f32 %v753
    %v755 = vsel %vm749, %v725, -inf
    %v756 = vsel %vm52, %v755, -inf
    %757 = vmax.xlane.f32.xlu0 %v756
    %v758 = vpop.xlane.xlu0 %757
    %v759 = vsel %vm750, %v725, inf
    %v760 = vsel %vm52, %v759, inf
    %761 = vmin.xlane.f32.xlu0 %v760
    %v762 = vpop.xlane.xlu0 %761
    %v763 = vadd.f32 %v758, 0.2
    %v764 = vsub.f32 %v763, %v762
    %v765 = vmax.f32 %v764, 0.0
    %v766 = vsel %vm116, %v765, 0.0
    %767 = vadd.xlane.f32.xlu0 %v766
    %v768 = vpop.xlane.xlu0 %767
    %v769 = vrot.slane %v768, 4
    %v770 = vadd.f32 %v768, %v769
    %v771 = vrot.slane %v770, 2
    %v772 = vadd.f32 %v770, %v771
    %v773 = vrot.slane %v772, 1
    %v774 = vadd.f32 %v772, %v773
    %s775 = vtos %v774
    %v776 = vrcp.pop 8.0
    %v777 = vmul.f32 8.0, %v776
    %v778 = vsub.f32 1.0, %v777
    %v779 = vmul.f32 %v776, %v778
    %v780 = vadd.f32 %v776, %v779
    %vm781 = vweird.f32 %v776
    %v782 = vsel %vm781, %v776, %v780
    %s783 = vtos %v782
    %s784 = smul.f32 %s775, %s783
    %v785 = vadd.f32 %v725, 0.2
    %v786 = vperm.slane %v725, 0
    %v787 = vsub.f32 %v785, %v786
    %v788 = vmax.f32 %v787, 0.0
    %v789 = vmul.f32 %v752, %v788
    %v790 = vperm.slane %v754, 0
    %v791 = vmul.f32 %v789, %v790
    %v792 = vadd.f32 %v791, 0.0
    %vm793 = vcmp.gt.f32.partialorder %v791, 0.0
    %v794 = vsel %vm793, 1, 0
    %v795 = vcvt.s32.f32 %v794
    %v796 = vadd.f32 %v795, 0.0
    %v797 = vperm.slane %v725, 1
    %v798 = vsub.f32 %v785, %v797
    %v799 = vmax.f32 %v798, 0.0
    %v800 = vmul.f32 %v752, %v799
    %v801 = vperm.slane %v754, 1
    %v802 = vmul.f32 %v800, %v801
    %v803 = vadd.f32 %v792, %v802
    %vm804 = vcmp.gt.f32.partialorder %v802, 0.0
    %v805 = vsel %vm804, 1, 0
    %v806 = vcvt.s32.f32 %v805
    %v807 = vadd.f32 %v796, %v806
    %v808 = vperm.slane %v725, 2
    %v809 = vsub.f32 %v785, %v808
    %v810 = vmax.f32 %v809, 0.0
    %v811 = vmul.f32 %v752, %v810
    %v812 = vperm.slane %v754, 2
    %v813 = vmul.f32 %v811, %v812
    %v814 = vadd.f32 %v803, %v813
    %vm815 = vcmp.gt.f32.partialorder %v813, 0.0
    %v816 = vsel %vm815, 1, 0
    %v817 = vcvt.s32.f32 %v816
    %v818 = vadd.f32 %v807, %v817
    %v819 = vperm.slane %v725, 3
    %v820 = vsub.f32 %v785, %v819
    %v821 = vmax.f32 %v820, 0.0
    %v822 = vmul.f32 %v752, %v821
    %v823 = vperm.slane %v754, 3
    %v824 = vmul.f32 %v822, %v823
    %v825 = vadd.f32 %v814, %v824
    %vm826 = vcmp.gt.f32.partialorder %v824, 0.0
    %v827 = vsel %vm826, 1, 0
    %v828 = vcvt.s32.f32 %v827
    %v829 = vadd.f32 %v818, %v828
    %v830 = vperm.slane %v725, 4
    %v831 = vsub.f32 %v785, %v830
    %v832 = vmax.f32 %v831, 0.0
    %v833 = vmul.f32 %v752, %v832
    %v834 = vperm.slane %v754, 4
    %v835 = vmul.f32 %v833, %v834
    %v836 = vadd.f32 %v825, %v835
    %vm837 = vcmp.gt.f32.partialorder %v835, 0.0
    %v838 = vsel %vm837, 1, 0
    %v839 = vcvt.s32.f32 %v838
    %v840 = vadd.f32 %v829, %v839
    %v841 = vperm.slane %v725, 5
    %v842 = vsub.f32 %v785, %v841
    %v843 = vmax.f32 %v842, 0.0
    %v844 = vmul.f32 %v752, %v843
    %v845 = vperm.slane %v754, 5
    %v846 = vmul.f32 %v844, %v845
    %v847 = vadd.f32 %v836, %v846
    %vm848 = vcmp.gt.f32.partialorder %v846, 0.0
    %v849 = vsel %vm848, 1, 0
    %v850 = vcvt.s32.f32 %v849
    %v851 = vadd.f32 %v840, %v850
    %v852 = vperm.slane %v725, 6
    %v853 = vsub.f32 %v785, %v852
    %v854 = vmax.f32 %v853, 0.0
    %v855 = vmul.f32 %v752, %v854
    %v856 = vperm.slane %v754, 6
    %v857 = vmul.f32 %v855, %v856
    %v858 = vadd.f32 %v847, %v857
    %vm859 = vcmp.gt.f32.partialorder %v857, 0.0
    %v860 = vsel %vm859, 1, 0
    %v861 = vcvt.s32.f32 %v860
    %v862 = vadd.f32 %v851, %v861
    %v863 = vperm.slane %v725, 7
    %v864 = vsub.f32 %v785, %v863
    %v865 = vmax.f32 %v864, 0.0
    %v866 = vmul.f32 %v752, %v865
    %v867 = vperm.slane %v754, 7
    %v868 = vmul.f32 %v866, %v867
    %v869 = vadd.f32 %v858, %v868
    %vm870 = vcmp.gt.f32.partialorder %v868, 0.0
    %v871 = vsel %vm870, 1, 0
    %v872 = vcvt.s32.f32 %v871
    %v873 = vadd.f32 %v862, %v872
    %v874 = vsel %vm52, %v869, 0.0
    %875 = vadd.xlane.f32.xlu0 %v874
    %v876 = vpop.xlane.xlu0 %875
    %v877 = vrot.slane %v876, 4
    %v878 = vadd.f32 %v876, %v877
    %v879 = vrot.slane %v878, 2
    %v880 = vadd.f32 %v878, %v879
    %v881 = vrot.slane %v880, 1
    %v882 = vadd.f32 %v880, %v881
    %s883 = vtos %v882
    %v884 = vsel %vm52, %v873, 0.0
    %885 = vadd.xlane.f32.xlu0 %v884
    %v886 = vpop.xlane.xlu0 %885
    %v887 = vrot.slane %v886, 4
    %v888 = vadd.f32 %v886, %v887
    %v889 = vrot.slane %v888, 2
    %v890 = vadd.f32 %v888, %v889
    %v891 = vrot.slane %v890, 1
    %v892 = vadd.f32 %v890, %v891
    %s893 = vtos %v892
    %p894 = scmp.gt.f32.partialorder %s893, 0.0
    %s895 = smax.f32 %s893, 1.0
    %v896 = vstv %s895
    %v897 = vrcp.pop %v896
    %v898 = vmul.f32 %v896, %v897
    %v899 = vsub.f32 1.0, %v898
    %v900 = vmul.f32 %v897, %v899
    %v901 = vadd.f32 %v897, %v900
    %vm902 = vweird.f32 %v896
    %vm903 = vweird.f32 %v897
    %vm904 = vmor %vm902, %vm903
    %v905 = vsel %vm904, %v897, %v901
    %v906 = vand.u32 2147483647, %v896
    %vm907 = vcmp.eq.f32.partialorder %v906, 8.507059e+37
    %v908 = vand.u32 %v896, 2147483648
    %v909 = vor.u32 1.1754944e-38, %v908
    %v910 = vsel %vm907, %v909, %v905
    %s911 = vtos %v910
    %s912 = smul.f32 %s883, %s911
    %s913 = scalar_select %p894, %s912, 0.0
    %v914 = vsel %vm23, %v670, -inf
    %915 = vmax.xlane.f32.xlu0 %v914
    %v916 = vpop.xlane.xlu0 %915
    %v917 = vsub.f32 %v670, %v916
    %v918 = vmul.f32 %v917, 1.442695
    %v919 = vpow.pop %v918
    %v920 = vsel %vm23, %v919, 0.0
    %921 = vadd.xlane.f32.xlu0 %v920
    %v922 = vpop.xlane.xlu0 %921
    %v923 = vlog2.pop %v922
    %v924 = vmul.f32 %v923, 0.6931472
    %v925 = vadd.f32 %v916, %v924
    %vm926 = vcmp.eq.s32.totalorder %v18, %v747
    %v927 = vsel %vm926, %v670, 0.0
    %v928 = vsel %vm23, %v927, 0.0
    %929 = vadd.xlane.f32.xlu0 %v928
    %v930 = vpop.xlane.xlu0 %929
    %v931 = vsub.f32 %v925, %v930
    %v932 = vsel %vm116, %v931, 0.0
    %933 = vadd.xlane.f32.xlu0 %v932
    %v934 = vpop.xlane.xlu0 %933
    %v935 = vrot.slane %v934, 4
    %v936 = vadd.f32 %v934, %v935
    %v937 = vrot.slane %v936, 2
    %v938 = vadd.f32 %v936, %v937
    %v939 = vrot.slane %v938, 1
    %v940 = vadd.f32 %v938, %v939
    %s941 = vtos %v940
    %vm942 = vcmp.eq.f32.partialorder %v670, %v916
    %v943 = vsel %vm942, %v18, 32
    %v944 = vsel %vm23, %v943, 2147483647
    %v945 = vand.u32 %v944, 65535
    %v946 = vshra.s32 %v944, 16
    %v947 = vcvt.s32.f32 %v945
    %v948 = vcvt.s32.f32 %v946
    %949 = vmin.xlane.f32.xlu0 %v948
    %v950 = vpop.xlane.xlu0 %949
    %vm951 = vcmp.eq.f32.partialorder %v948, %v950
    %v952 = vsel %vm951, %v947, inf
    %953 = vmin.xlane.f32.xlu0 %v952
    %v954 = vpop.xlane.xlu0 %953
    %v955 = vcvt.f32.s32 %v954
    %v956 = vcvt.f32.s32 %v950
    %v957 = vshll.u32 %v956, 16
    %v958 = vadd.s32 %v957, %v955
    %vm959 = vcmp.eq.s32.totalorder %v958, %v674
    %v960 = vsel %vm959, 1, 0
    %v961 = vcvt.s32.f32 %v960
    %v962 = vsel %vm116, %v961, 0.0
    %963 = vadd.xlane.f32.xlu0 %v962
    %v964 = vpop.xlane.xlu0 %963
    %v965 = vrot.slane %v964, 4
    %v966 = vadd.f32 %v964, %v965
    %v967 = vrot.slane %v966, 2
    %v968 = vadd.f32 %v966, %v967
    %v969 = vrot.slane %v968, 1
    %v970 = vadd.f32 %v968, %v969
    %s971 = vtos %v970
    %v972 = vstv %s913
    %v973 = vsel %vm323, %v972, 0.0
    %v974 = vstv %s784
    %v975 = vsel %vm326, %v974, 0.0
    %v976 = vadd.f32 %v973, %v975
    %v977 = vstv %s744
    %v978 = vsel %vm330, %v977, 0.0
    %v979 = vadd.f32 %v976, %v978
    %v980 = vstv %s893
    %v981 = vsel %vm334, %v980, 0.0
    %v982 = vadd.f32 %v979, %v981
    %v983 = vstv %s941
    %v984 = vsel %vm338, %v983, 0.0
    %v985 = vadd.f32 %v982, %v984
    %v986 = vstv %s971
    %v987 = vsel %vm342, %v986, 0.0
    %v988 = vadd.f32 %v985, %v987
    %s989 = scalar_lea.vmem [#allocation2], 16
    %990 = vst [vmem:[%s989] sm:$0xff] %v988
    %s991 = scalar_lea.vmem %s0, 24
    %v992 = vld [vmem:[%s991] sm:$0xff]
    %s993 = scalar_lea.vmem %s1, 3
    %v994 = vld [vmem:[%s993] sm:$0x1]
    %s995 = scalar_lea.vmem %s2, 24
    %v996 = vld [vmem:[%s995] sm:$0xff]
    %v998 = vsel %vm23, %v992, 0
    %1000 = vmatpush.xpose.msra.mxu0 0.0
    %1001 = vmatpush.xpose.msra.mxu0 0.0
    %1002 = vmatpush.xpose.msra.mxu0 0.0
    %1003 = vmatpush.xpose.msra.mxu0 0.0
    %1004 = vmatpush.xpose.msra.mxu0 0.0
    %1005 = vmatpush.xpose.msra.mxu0 0.0
    %1006 = vmatpush.xpose.msra.mxu0 0.0
    %1007 = vmatpush.xpose.msra.mxu0 0.0
    %1008 = vmatpush.xpose.msra.mxu0 0.0
    %1009 = vmatpush.xpose.msra.mxu0 0.0
    %1010 = vmatpush.xpose.msra.mxu0 0.0
    %1011 = vmatpush.xpose.msra.mxu0 0.0
    %1012 = vmatpush.xpose.msra.mxu0 0.0
    %1013 = vmatpush.xpose.msra.mxu0 0.0
    %1014 = vmatpush.xpose.msra.mxu0 0.0
    %1015 = vmatpush.xpose.msra.mxu0 %v998
    %1016 = vmatmul.f32.gmra.mxu0 %v998
    %v1017 = vpop.f32.mrf.mxu0
    %v1018 = vadd.f32 0.0, %v1017
    %1019 = vdwg.mxu0
    %v1020 = vmul.f32 %v992, %v992
    %v1021 = vsel %vm23, %v1020, 0.0
    %1022 = vadd.xlane.f32.xlu0 %v1021
    %v1023 = vpop.xlane.xlu0 %1022
    %v1024 = vsel %vm19, %v1018, 0.0
    %v1025 = vsel %vm52, %v1024, 0.0
    %v1026 = vrot.slane %v1025, 4
    %v1027 = vadd.f32 %v1025, %v1026
    %v1028 = vrot.slane %v1027, 2
    %v1029 = vadd.f32 %v1027, %v1028
    %v1030 = vrot.slane %v1029, 1
    %v1031 = vadd.f32 %v1029, %v1030
    %v1032 = vadd.f32 %v1023, %v1031
    %v1033 = vmul.f32 %v1018, 2.0
    %v1034 = vsub.f32 %v1032, %v1033
    %v1035 = vmax.f32 %v1034, 0.0
    %v1036 = vrsqrt.pop %v1035
    %v1037 = vmul.f32 %v1036, %v1035
    %v1038 = vmul.f32 %v1037, %v1036
    %v1039 = vmul.f32 0.5, %v1038
    %v1040 = vsub.f32 1.5, %v1039
    %v1041 = vmul.f32 %v1036, %v1040
    %v1042 = vmul.f32 %v1035, %v1041
    %vm1043 = vcmp.eq.f32.partialorder %v1035, inf
    %v1044 = vsel %vm1043, %v1035, %v1042
    %vm1045 = vcmp.eq.f32.partialorder %v1035, 0.0
    %v1046 = vand.u32 %v1035, 2147483648
    %v1047 = vsel %vm1045, %v1046, %v1044
    %v1048 = vsel %vm52, %v1047, 0.0
    %1049 = vadd.xlane.f32.xlu0 %v1048
    %v1050 = vpop.xlane.xlu0 %1049
    %v1051 = vrot.slane %v1050, 4
    %v1052 = vadd.f32 %v1050, %v1051
    %v1053 = vrot.slane %v1052, 2
    %v1054 = vadd.f32 %v1052, %v1053
    %v1055 = vrot.slane %v1054, 1
    %v1056 = vadd.f32 %v1054, %v1055
    %s1057 = vtos %v1056
    %v1058 = vrcp.pop 64.0
    %v1059 = vmul.f32 64.0, %v1058
    %v1060 = vsub.f32 1.0, %v1059
    %v1061 = vmul.f32 %v1058, %v1060
    %v1062 = vadd.f32 %v1058, %v1061
    %vm1063 = vweird.f32 %v1058
    %v1064 = vsel %vm1063, %v1058, %v1062
    %s1065 = vtos %v1064
    %s1066 = smul.f32 %s1057, %s1065
    %1067 = vset.pattern.permute.xlu0 0
    %1068 = vperm.xlu0 %1067, %v996
    %v1069 = vpop.permute.xlu0 %1068
    %v1070 = vperm.slane %v994, 0
    %vm1071 = vcmp.eq.s32.totalorder %v1069, %v1070
    %vm1072 = vmxor %vm1071, 1
    %v1073 = vsel %vm1071, 1, 0
    %v1074 = vcvt.s32.f32 %v1073
    %v1075 = vsel %vm1072, 1, 0
    %v1076 = vcvt.s32.f32 %v1075
    %v1077 = vsel %vm1071, %v1047, -inf
    %v1078 = vsel %vm52, %v1077, -inf
    %1079 = vmax.xlane.f32.xlu0 %v1078
    %v1080 = vpop.xlane.xlu0 %1079
    %v1081 = vsel %vm1072, %v1047, inf
    %v1082 = vsel %vm52, %v1081, inf
    %1083 = vmin.xlane.f32.xlu0 %v1082
    %v1084 = vpop.xlane.xlu0 %1083
    %v1085 = vadd.f32 %v1080, 0.2
    %v1086 = vsub.f32 %v1085, %v1084
    %v1087 = vmax.f32 %v1086, 0.0
    %v1088 = vsel %vm116, %v1087, 0.0
    %1089 = vadd.xlane.f32.xlu0 %v1088
    %v1090 = vpop.xlane.xlu0 %1089
    %v1091 = vrot.slane %v1090, 4
    %v1092 = vadd.f32 %v1090, %v1091
    %v1093 = vrot.slane %v1092, 2
    %v1094 = vadd.f32 %v1092, %v1093
    %v1095 = vrot.slane %v1094, 1
    %v1096 = vadd.f32 %v1094, %v1095
    %s1097 = vtos %v1096
    %v1098 = vrcp.pop 8.0
    %v1099 = vmul.f32 8.0, %v1098
    %v1100 = vsub.f32 1.0, %v1099
    %v1101 = vmul.f32 %v1098, %v1100
    %v1102 = vadd.f32 %v1098, %v1101
    %vm1103 = vweird.f32 %v1098
    %v1104 = vsel %vm1103, %v1098, %v1102
    %s1105 = vtos %v1104
    %s1106 = smul.f32 %s1097, %s1105
    %v1107 = vadd.f32 %v1047, 0.2
    %v1108 = vperm.slane %v1047, 0
    %v1109 = vsub.f32 %v1107, %v1108
    %v1110 = vmax.f32 %v1109, 0.0
    %v1111 = vmul.f32 %v1074, %v1110
    %v1112 = vperm.slane %v1076, 0
    %v1113 = vmul.f32 %v1111, %v1112
    %v1114 = vadd.f32 %v1113, 0.0
    %vm1115 = vcmp.gt.f32.partialorder %v1113, 0.0
    %v1116 = vsel %vm1115, 1, 0
    %v1117 = vcvt.s32.f32 %v1116
    %v1118 = vadd.f32 %v1117, 0.0
    %v1119 = vperm.slane %v1047, 1
    %v1120 = vsub.f32 %v1107, %v1119
    %v1121 = vmax.f32 %v1120, 0.0
    %v1122 = vmul.f32 %v1074, %v1121
    %v1123 = vperm.slane %v1076, 1
    %v1124 = vmul.f32 %v1122, %v1123
    %v1125 = vadd.f32 %v1114, %v1124
    %vm1126 = vcmp.gt.f32.partialorder %v1124, 0.0
    %v1127 = vsel %vm1126, 1, 0
    %v1128 = vcvt.s32.f32 %v1127
    %v1129 = vadd.f32 %v1118, %v1128
    %v1130 = vperm.slane %v1047, 2
    %v1131 = vsub.f32 %v1107, %v1130
    %v1132 = vmax.f32 %v1131, 0.0
    %v1133 = vmul.f32 %v1074, %v1132
    %v1134 = vperm.slane %v1076, 2
    %v1135 = vmul.f32 %v1133, %v1134
    %v1136 = vadd.f32 %v1125, %v1135
    %vm1137 = vcmp.gt.f32.partialorder %v1135, 0.0
    %v1138 = vsel %vm1137, 1, 0
    %v1139 = vcvt.s32.f32 %v1138
    %v1140 = vadd.f32 %v1129, %v1139
    %v1141 = vperm.slane %v1047, 3
    %v1142 = vsub.f32 %v1107, %v1141
    %v1143 = vmax.f32 %v1142, 0.0
    %v1144 = vmul.f32 %v1074, %v1143
    %v1145 = vperm.slane %v1076, 3
    %v1146 = vmul.f32 %v1144, %v1145
    %v1147 = vadd.f32 %v1136, %v1146
    %vm1148 = vcmp.gt.f32.partialorder %v1146, 0.0
    %v1149 = vsel %vm1148, 1, 0
    %v1150 = vcvt.s32.f32 %v1149
    %v1151 = vadd.f32 %v1140, %v1150
    %v1152 = vperm.slane %v1047, 4
    %v1153 = vsub.f32 %v1107, %v1152
    %v1154 = vmax.f32 %v1153, 0.0
    %v1155 = vmul.f32 %v1074, %v1154
    %v1156 = vperm.slane %v1076, 4
    %v1157 = vmul.f32 %v1155, %v1156
    %v1158 = vadd.f32 %v1147, %v1157
    %vm1159 = vcmp.gt.f32.partialorder %v1157, 0.0
    %v1160 = vsel %vm1159, 1, 0
    %v1161 = vcvt.s32.f32 %v1160
    %v1162 = vadd.f32 %v1151, %v1161
    %v1163 = vperm.slane %v1047, 5
    %v1164 = vsub.f32 %v1107, %v1163
    %v1165 = vmax.f32 %v1164, 0.0
    %v1166 = vmul.f32 %v1074, %v1165
    %v1167 = vperm.slane %v1076, 5
    %v1168 = vmul.f32 %v1166, %v1167
    %v1169 = vadd.f32 %v1158, %v1168
    %vm1170 = vcmp.gt.f32.partialorder %v1168, 0.0
    %v1171 = vsel %vm1170, 1, 0
    %v1172 = vcvt.s32.f32 %v1171
    %v1173 = vadd.f32 %v1162, %v1172
    %v1174 = vperm.slane %v1047, 6
    %v1175 = vsub.f32 %v1107, %v1174
    %v1176 = vmax.f32 %v1175, 0.0
    %v1177 = vmul.f32 %v1074, %v1176
    %v1178 = vperm.slane %v1076, 6
    %v1179 = vmul.f32 %v1177, %v1178
    %v1180 = vadd.f32 %v1169, %v1179
    %vm1181 = vcmp.gt.f32.partialorder %v1179, 0.0
    %v1182 = vsel %vm1181, 1, 0
    %v1183 = vcvt.s32.f32 %v1182
    %v1184 = vadd.f32 %v1173, %v1183
    %v1185 = vperm.slane %v1047, 7
    %v1186 = vsub.f32 %v1107, %v1185
    %v1187 = vmax.f32 %v1186, 0.0
    %v1188 = vmul.f32 %v1074, %v1187
    %v1189 = vperm.slane %v1076, 7
    %v1190 = vmul.f32 %v1188, %v1189
    %v1191 = vadd.f32 %v1180, %v1190
    %vm1192 = vcmp.gt.f32.partialorder %v1190, 0.0
    %v1193 = vsel %vm1192, 1, 0
    %v1194 = vcvt.s32.f32 %v1193
    %v1195 = vadd.f32 %v1184, %v1194
    %v1196 = vsel %vm52, %v1191, 0.0
    %1197 = vadd.xlane.f32.xlu0 %v1196
    %v1198 = vpop.xlane.xlu0 %1197
    %v1199 = vrot.slane %v1198, 4
    %v1200 = vadd.f32 %v1198, %v1199
    %v1201 = vrot.slane %v1200, 2
    %v1202 = vadd.f32 %v1200, %v1201
    %v1203 = vrot.slane %v1202, 1
    %v1204 = vadd.f32 %v1202, %v1203
    %s1205 = vtos %v1204
    %v1206 = vsel %vm52, %v1195, 0.0
    %1207 = vadd.xlane.f32.xlu0 %v1206
    %v1208 = vpop.xlane.xlu0 %1207
    %v1209 = vrot.slane %v1208, 4
    %v1210 = vadd.f32 %v1208, %v1209
    %v1211 = vrot.slane %v1210, 2
    %v1212 = vadd.f32 %v1210, %v1211
    %v1213 = vrot.slane %v1212, 1
    %v1214 = vadd.f32 %v1212, %v1213
    %s1215 = vtos %v1214
    %p1216 = scmp.gt.f32.partialorder %s1215, 0.0
    %s1217 = smax.f32 %s1215, 1.0
    %v1218 = vstv %s1217
    %v1219 = vrcp.pop %v1218
    %v1220 = vmul.f32 %v1218, %v1219
    %v1221 = vsub.f32 1.0, %v1220
    %v1222 = vmul.f32 %v1219, %v1221
    %v1223 = vadd.f32 %v1219, %v1222
    %vm1224 = vweird.f32 %v1218
    %vm1225 = vweird.f32 %v1219
    %vm1226 = vmor %vm1224, %vm1225
    %v1227 = vsel %vm1226, %v1219, %v1223
    %v1228 = vand.u32 2147483647, %v1218
    %vm1229 = vcmp.eq.f32.partialorder %v1228, 8.507059e+37
    %v1230 = vand.u32 %v1218, 2147483648
    %v1231 = vor.u32 1.1754944e-38, %v1230
    %v1232 = vsel %vm1229, %v1231, %v1227
    %s1233 = vtos %v1232
    %s1234 = smul.f32 %s1205, %s1233
    %s1235 = scalar_select %p1216, %s1234, 0.0
    %v1236 = vsel %vm23, %v992, -inf
    %1237 = vmax.xlane.f32.xlu0 %v1236
    %v1238 = vpop.xlane.xlu0 %1237
    %v1239 = vsub.f32 %v992, %v1238
    %v1240 = vmul.f32 %v1239, 1.442695
    %v1241 = vpow.pop %v1240
    %v1242 = vsel %vm23, %v1241, 0.0
    %1243 = vadd.xlane.f32.xlu0 %v1242
    %v1244 = vpop.xlane.xlu0 %1243
    %v1245 = vlog2.pop %v1244
    %v1246 = vmul.f32 %v1245, 0.6931472
    %v1247 = vadd.f32 %v1238, %v1246
    %vm1248 = vcmp.eq.s32.totalorder %v18, %v1069
    %v1249 = vsel %vm1248, %v992, 0.0
    %v1250 = vsel %vm23, %v1249, 0.0
    %1251 = vadd.xlane.f32.xlu0 %v1250
    %v1252 = vpop.xlane.xlu0 %1251
    %v1253 = vsub.f32 %v1247, %v1252
    %v1254 = vsel %vm116, %v1253, 0.0
    %1255 = vadd.xlane.f32.xlu0 %v1254
    %v1256 = vpop.xlane.xlu0 %1255
    %v1257 = vrot.slane %v1256, 4
    %v1258 = vadd.f32 %v1256, %v1257
    %v1259 = vrot.slane %v1258, 2
    %v1260 = vadd.f32 %v1258, %v1259
    %v1261 = vrot.slane %v1260, 1
    %v1262 = vadd.f32 %v1260, %v1261
    %s1263 = vtos %v1262
    %vm1264 = vcmp.eq.f32.partialorder %v992, %v1238
    %v1265 = vsel %vm1264, %v18, 32
    %v1266 = vsel %vm23, %v1265, 2147483647
    %v1267 = vand.u32 %v1266, 65535
    %v1268 = vshra.s32 %v1266, 16
    %v1269 = vcvt.s32.f32 %v1267
    %v1270 = vcvt.s32.f32 %v1268
    %1271 = vmin.xlane.f32.xlu0 %v1270
    %v1272 = vpop.xlane.xlu0 %1271
    %vm1273 = vcmp.eq.f32.partialorder %v1270, %v1272
    %v1274 = vsel %vm1273, %v1269, inf
    %1275 = vmin.xlane.f32.xlu0 %v1274
    %v1276 = vpop.xlane.xlu0 %1275
    %v1277 = vcvt.f32.s32 %v1276
    %v1278 = vcvt.f32.s32 %v1272
    %v1279 = vshll.u32 %v1278, 16
    %v1280 = vadd.s32 %v1279, %v1277
    %vm1281 = vcmp.eq.s32.totalorder %v1280, %v996
    %v1282 = vsel %vm1281, 1, 0
    %v1283 = vcvt.s32.f32 %v1282
    %v1284 = vsel %vm116, %v1283, 0.0
    %1285 = vadd.xlane.f32.xlu0 %v1284
    %v1286 = vpop.xlane.xlu0 %1285
    %v1287 = vrot.slane %v1286, 4
    %v1288 = vadd.f32 %v1286, %v1287
    %v1289 = vrot.slane %v1288, 2
    %v1290 = vadd.f32 %v1288, %v1289
    %v1291 = vrot.slane %v1290, 1
    %v1292 = vadd.f32 %v1290, %v1291
    %s1293 = vtos %v1292
    %v1294 = vstv %s1235
    %v1295 = vsel %vm323, %v1294, 0.0
    %v1296 = vstv %s1106
    %v1297 = vsel %vm326, %v1296, 0.0
    %v1298 = vadd.f32 %v1295, %v1297
    %v1299 = vstv %s1066
    %v1300 = vsel %vm330, %v1299, 0.0
    %v1301 = vadd.f32 %v1298, %v1300
    %v1302 = vstv %s1215
    %v1303 = vsel %vm334, %v1302, 0.0
    %v1304 = vadd.f32 %v1301, %v1303
    %v1305 = vstv %s1263
    %v1306 = vsel %vm338, %v1305, 0.0
    %v1307 = vadd.f32 %v1304, %v1306
    %v1308 = vstv %s1293
    %v1309 = vsel %vm342, %v1308, 0.0
    %v1310 = vadd.f32 %v1307, %v1309
    %s1311 = scalar_lea.vmem [#allocation2], 24
    %1312 = vst [vmem:[%s1311] sm:$0xff] %v1310
    // Predicated region
    $region14: #{tpu_custom_call.1} parent=1 // pred_check
      _
    $region15: #{tpu_custom_call.1} parent=1 // pred_check_branch
      %1314 = sbr.rel (0) target = $region17
    $region16: #{tpu_custom_call.1} parent=1 // pred_region
      %1316 = vsyncadd [#allocation3], 0
      %s1317 = sshll.u32 [#allocation2], 4
      %s1318 = int_to_ptr.vmem [resolvable:$true] %s1317
      %s1319 = sshll.u32 %s3, 4
      %s1320 = int_to_ptr.hbm [resolvable:$true] %s1319
      %1325 = dma.vmem_to_hbm [thread:$0]  %s1318, 512, %s1320, [#allocation3], 128, 128, 8
    $region17: #{tpu_custom_call.1} parent=1 // pred_fallthru
      _
    // Predicated region
    $region18: #{tpu_custom_call.1} parent=1 // pred_check
      _
    $region19: #{tpu_custom_call.1} parent=1 // pred_check_branch
      %1327 = sbr.rel (0) target = $region21
    $region20: #{tpu_custom_call.1} parent=1 // pred_region
      %1329 = dma.done [#allocation3], 512
    $region21: #{tpu_custom_call.1} parent=1 // pred_fallthru
      _
    %1330 = vsyncpa [#allocation3], 1

</llo_original>
